<compile_context>
chip_gen: v5e
topology: v5e:2x2
jax: 0.10.0
libtpu: 0.0.40
codegen_flags: <defaults>
</compile_context>

<pallas_src>
import jax
import jax.numpy as jnp
from jax.experimental import pallas as pl
from jax.experimental.pallas import tpu as pltpu


# --------------------------------------------------------------------------- #
# Kernel
# --------------------------------------------------------------------------- #
def make_lora_mha_kernel(heads, dim_head, lora_r, head_chunk, compute_dtype):
    inner = heads * dim_head
    r = lora_r
    cdt = compute_dtype
    n_chunks = heads // head_chunk

    def kernel(x_ref, wbig_ref, bbig_ref, bq_ref, bv_ref, wout_ref, bout_ref,
               o_ref):
        x = x_ref[0]                                    # (S, D), compute dtype
        S = x.shape[0]

        # ---- single fused projection: [q | k | v | mid_q | mid_v | pad] ----
        # (attn_scale folded into the q columns; LoRA-A columns appended)
        qkvm = jnp.dot(x, wbig_ref[...], preferred_element_type=jnp.float32)
        qkvm = qkvm + bbig_ref[...]                     # (S, Wtot), f32

        # ---- LoRA-B deltas (scaling / attn_scale pre-folded into B) ----
        mid_q = qkvm[:, 3 * inner:3 * inner + r].astype(cdt)        # (S, r)
        mid_v = qkvm[:, 3 * inner + r:3 * inner + 2 * r].astype(cdt)
        dq = jnp.dot(mid_q, bq_ref[...], preferred_element_type=jnp.float32)
        dv = jnp.dot(mid_v, bv_ref[...], preferred_element_type=jnp.float32)

        q = (qkvm[:, 0 * inner:1 * inner] + dq).astype(cdt)   # already * scale
        k = qkvm[:, 1 * inner:2 * inner].astype(cdt)
        v = (qkvm[:, 2 * inner:3 * inner] + dv).astype(cdt)

        # ---- head-chunked attention with fused output projection ----------
        y = None
        for c in range(n_chunks):                     # static unroll (small)
            lo = c * head_chunk * dim_head
            hi = lo + head_chunk * dim_head

            qh = jnp.swapaxes(q[:, lo:hi].reshape(S, head_chunk, dim_head), 0, 1)
            kh = jnp.swapaxes(k[:, lo:hi].reshape(S, head_chunk, dim_head), 0, 1)
            vh = jnp.swapaxes(v[:, lo:hi].reshape(S, head_chunk, dim_head), 0, 1)

            s = jnp.einsum("hqd,hkd->hqk", qh, kh,
                           preferred_element_type=jnp.float32)      # (Hc,S,S)
            s = s - jnp.max(s, axis=-1, keepdims=True)
            p = jnp.exp(s)
            l = jnp.sum(p, axis=-1, keepdims=True)                  # (Hc,S,1)
            o = jnp.einsum("hqk,hkd->hqd", p.astype(cdt), vh,
                           preferred_element_type=jnp.float32)      # (Hc,S,dh)
            # deferred softmax normalization: multiply the small (Hc,S,dh)
            # output instead of the (Hc,S,S) probabilities.
            o = o * pl.reciprocal(l, approx=True)

            # fused head-merge + output projection for this head group
            o_s = jnp.swapaxes(o, 0, 1).reshape(S, head_chunk * dim_head)
            part = jnp.dot(o_s.astype(cdt), wout_ref[lo:hi, :],
                           preferred_element_type=jnp.float32)      # (S, Dout)
            y = part if y is None else y + part

        y = y + bout_ref[...]
        o_ref[0] = y.astype(o_ref.dtype)

    return kernel


# --------------------------------------------------------------------------- #
# One-time weight preparation (hoisted out of the forward path)
# --------------------------------------------------------------------------- #
def prepare_lora_mha_weights(wqkv, bqkv, a_q, a_v, b_q, b_v, wout, bout, *,
                             heads, dim_head, lora_r, lora_alpha,
                             compute_dtype=None):
    """Pre-transpose / fuse / scale all weights once. Returns a param dict."""
    inner = heads * dim_head
    r = lora_r
    d_in = wqkv.shape[1]
    d_out = wout.shape[0]
    scaling = float(lora_alpha) / float(lora_r)
    attn_scale = float(dim_head) ** (-0.5)
    cdt = jnp.dtype(wqkv.dtype if compute_dtype is None else compute_dtype)
    f32 = jnp.float32

    # Fused main weight: [ attn_scale*Wq.T | Wk.T | Wv.T | Aq.T | Av.T | 0 ]
    wq_t = (attn_scale * wqkv[0 * inner:1 * inner].astype(f32)).T   # (D, inner)
    wk_t = wqkv[1 * inner:2 * inner].astype(f32).T
    wv_t = wqkv[2 * inner:3 * inner].astype(f32).T
    cols = 3 * inner + 2 * r
    wtot = ((cols + 127) // 128) * 128          # pad tail to a 128-lane multiple
    parts = [wq_t, wk_t, wv_t, a_q.astype(f32).T, a_v.astype(f32).T]
    if wtot > cols:
        parts.append(jnp.zeros((d_in, wtot - cols), f32))
    w_big = jnp.concatenate(parts, axis=1).astype(cdt)              # (D, Wtot)

    b_big = jnp.zeros((wtot,), f32)
    b_big = b_big.at[0:inner].set(attn_scale * bqkv[0:inner].astype(f32))
    b_big = b_big.at[inner:3 * inner].set(bqkv[inner:3 * inner].astype(f32))
    b_big = b_big.reshape(1, wtot)

    # LoRA-B with scaling (and attn_scale for the q group) folded in.
    bq_s = (attn_scale * scaling * b_q.astype(f32).T).astype(cdt)   # (r, inner)
    bv_s = (scaling * b_v.astype(f32).T).astype(cdt)                # (r, inner)

    wout_t = wout.astype(f32).T.astype(cdt)                         # (inner, Dout)
    bout2 = bout.astype(f32).reshape(1, d_out)

    return dict(w_big=w_big, b_big=b_big, bq_s=bq_s, bv_s=bv_s,
                wout_t=wout_t, bout2=bout2,
                heads=heads, dim_head=dim_head, lora_r=r,
                inner=inner, wtot=wtot, d_out=d_out, compute_dtype=cdt)


# --------------------------------------------------------------------------- #
# Helpers
# --------------------------------------------------------------------------- #
def _pick_head_chunk(heads, seq, max_score_bytes):
    """Largest divisor of `heads` whose f32 scores+probs fit the budget."""
    for hc in range(heads, 0, -1):
        if heads % hc == 0 and hc * seq * seq * 4 * 2 <= max_score_bytes:
            return hc
    return 1


def _vmem_budget(prep, seq, d_in, head_chunk):
    """Derive vmem_limit_bytes from the actual buffers + chip VMEM capacity."""
    def nbytes(a):
        return int(a.size) * a.dtype.itemsize

    weight_names = ("w_big", "b_big", "bq_s", "bv_s", "wout_t", "bout2")
    weight_bytes = 2 * sum(nbytes(prep[n]) for n in weight_names)   # worst case
    cdt_sz = jnp.dtype(prep["compute_dtype"]).itemsize
    inner, wtot, dh, d_out = (prep["inner"], prep["wtot"],
                              prep["dim_head"], prep["d_out"])
    io_bytes = 2 * 2 * seq * max(d_in, d_out) * 4        # x + out, double-buffered
    interm = (seq * wtot * 4                              # fused qkv result (f32)
              + 3 * seq * inner * (4 + cdt_sz)            # q/k/v slices + casts
              + 2 * head_chunk * seq * seq * 4            # scores + probs
              + 2 * head_chunk * seq * dh * 4             # o + merged o
              + seq * d_out * 4)                          # y accumulator
    needed = weight_bytes + io_bytes + int(1.5 * interm)

    try:
        phys = int(pltpu.get_tpu_info().vmem_capacity_bytes)
    except Exception:
        phys = 64 * 1024 * 1024                           # conservative (v7x)
    limit = max(needed, 32 * 1024 * 1024)
    limit = min(limit, phys - 8 * 1024 * 1024)
    return int(limit)


# --------------------------------------------------------------------------- #
# Forward
# --------------------------------------------------------------------------- #
def lora_mha_apply(prep, x, *, max_score_bytes=8 * 1024 * 1024):
    B, S, D = x.shape
    heads, dim_head = prep["heads"], prep["dim_head"]
    inner, r, wtot, d_out = prep["inner"], prep["lora_r"], prep["wtot"], prep["d_out"]
    cdt = prep["compute_dtype"]
    out_dtype = x.dtype

    head_chunk = _pick_head_chunk(heads, S, max_score_bytes)
    kernel = make_lora_mha_kernel(heads, dim_head, r, head_chunk, cdt)
    vmem_limit = _vmem_budget(prep, S, D, head_chunk)

    x_c = x.astype(cdt)
    args = (x_c, prep["w_big"], prep["b_big"], prep["bq_s"], prep["bv_s"],
            prep["wout_t"], prep["bout2"])

    def build(single_buffer_weights):
        # Weight/bias blocks never change across the batch grid: single-buffer
        # them (no 2x VMEM) when supported.
        wkw = ({"pipeline_mode": pl.Buffered(1)}
               if single_buffer_weights else {})
        const = lambda b: (0, 0)
        in_specs = [
            pl.BlockSpec((1, S, D), lambda b: (b, 0, 0)),          # x
            pl.BlockSpec((D, wtot), const, **wkw),                 # fused W
            pl.BlockSpec((1, wtot), const, **wkw),                 # fused bias
            pl.BlockSpec((r, inner), const, **wkw),                # Bq (scaled)
            pl.BlockSpec((r, inner), const, **wkw),                # Bv (scaled)
            pl.BlockSpec((inner, d_out), const, **wkw),            # Wout^T
            pl.BlockSpec((1, d_out), const, **wkw),                # b_out
        ]
        grid_spec = pltpu.PrefetchScalarGridSpec(
            num_scalar_prefetch=0,
            grid=(B,),
            in_specs=in_specs,
            out_specs=pl.BlockSpec((1, S, d_out), lambda b: (b, 0, 0)),
        )
        return pl.pallas_call(
            kernel,
            out_shape=jax.ShapeDtypeStruct((B, S, d_out), out_dtype),
            grid_spec=grid_spec,
            compiler_params=pltpu.CompilerParams(
                dimension_semantics=("parallel",),   # batch shards across TCs
                vmem_limit_bytes=vmem_limit),
        )

    try:
        return build(True)(*args)
    except Exception:
        # TODO(synk): pl.Buffered(1) not accepted by this jax build — fall back
        # to default double-buffered constant-index weight specs.
        return build(False)(*args)


def lora_mha_forward(x, wqkv, bqkv, a_q, a_v, b_q, b_v, wout, bout, *,
                     heads, dim_head, lora_r, lora_alpha, compute_dtype=None):
    """Convenience wrapper (prep + apply). Prefer hoisting prepare_* per model."""
    prep = prepare_lora_mha_weights(
        wqkv, bqkv, a_q, a_v, b_q, b_v, wout, bout,
        heads=heads, dim_head=dim_head, lora_r=lora_r, lora_alpha=lora_alpha,
        compute_dtype=compute_dtype)
    return lora_mha_apply(prep, x)


# --------------------------------------------------------------------------- #
# Pure-JAX reference matching the PyTorch forward semantics
# --------------------------------------------------------------------------- #
def ref_forward(x, wqkv, bqkv, a_q, a_v, b_q, b_v, wout, bout, *,
                heads, dim_head, lora_r, lora_alpha):
    B, S, D = x.shape
    inner = heads * dim_head
    scaling = lora_alpha / lora_r
    qkv = x @ wqkv.T + bqkv
    q = qkv[..., 0 * inner:1 * inner] + scaling * ((x @ a_q.T) @ b_q.T)
    k = qkv[..., 1 * inner:2 * inner]
    v = qkv[..., 2 * inner:3 * inner] + scaling * ((x @ a_v.T) @ b_v.T)

    def to_heads(t):
        return t.reshape(B, S, heads, dim_head).transpose(0, 2, 1, 3)

    q, k, v = to_heads(q), to_heads(k), to_heads(v)
    s = jnp.einsum("bhqd,bhkd->bhqk", q, k) * (dim_head ** -0.5)
    p = jax.nn.softmax(s, axis=-1)
    o = jnp.einsum("bhqk,bhkd->bhqd", p, v)
    o = o.transpose(0, 2, 1, 3).reshape(B, S, inner)
    return o @ wout.T + bout


# --------------------------------------------------------------------------- #
if __name__ == "__main__":
    # Small, module-consistent shapes (CLIP path: query_dim == inner_dim).
    batch = 2
    seq = 8
    heads = 4
    dim_head = 8
    query_dim = heads * dim_head
    inner_dim = heads * dim_head
    lora_r = 4
    lora_alpha = 8

    key = jax.random.PRNGKey(0)
    ks = jax.random.split(key, 9)
    dt = jnp.float32

    x = jax.random.normal(ks[0], (batch, seq, query_dim), dt)
    # qkv MergedLinear params (bias=True, matching CLIP attention usage).
    wqkv = jax.random.normal(ks[1], (3 * inner_dim, query_dim), dt) * 0.05
    bqkv = jax.random.normal(ks[2], (3 * inner_dim,), dt) * 0.05
    # LoRA A/B for the enabled groups (q, v); k group (enable_lora=False) has none.
    a_q = jax.random.normal(ks[3], (lora_r, query_dim), dt) * 0.05
    a_v = jax.random.normal(ks[4], (lora_r, query_dim), dt) * 0.05
    b_q = jax.random.normal(ks[5], (inner_dim, lora_r), dt) * 0.05
    b_v = jax.random.normal(ks[6], (inner_dim, lora_r), dt) * 0.05
    # Output projection nn.Linear(inner_dim, query_dim).
    wout = jax.random.normal(ks[7], (query_dim, inner_dim), dt) * 0.05
    bout = jax.random.normal(ks[8], (query_dim,), dt) * 0.05

    args = (x, wqkv, bqkv, a_q, a_v, b_q, b_v, wout, bout)
    hp = dict(heads=heads, dim_head=dim_head, lora_r=lora_r,
              lora_alpha=lora_alpha)
    weights = args[1:]

    expected = ref_forward(*args, **hp)

    # Weight prep is hoisted: done once per (weights, compute_dtype), reused.
    prep_f32 = prepare_lora_mha_weights(*weights, **hp)
    out = jax.block_until_ready(lora_mha_apply(prep_f32, x))
    assert out.shape == (batch, seq, query_dim)
    err = float(jnp.max(jnp.abs(out - expected)))
    assert jnp.allclose(out, expected, atol=3e-3, rtol=3e-3), err

    # bf16 matmul operands, f32 accumulation + softmax (v6e/v7x MXU fast path).
    prep_bf16 = prepare_lora_mha_weights(*weights, compute_dtype=jnp.bfloat16,
                                         **hp)
    out_bf16 = jax.block_until_ready(lora_mha_apply(prep_bf16, x))
    err_bf16 = float(jnp.max(jnp.abs(out_bf16 - expected)))
    assert jnp.allclose(out_bf16, expected, atol=3e-2, rtol=3e-2), err_bf16

    # Exercise the head-chunked attention path (used at long S / v7x VMEM).
    out_chunk = jax.block_until_ready(
        lora_mha_apply(prep_f32, x, max_score_bytes=1024))
    err_chunk = float(jnp.max(jnp.abs(out_chunk - expected)))
    assert jnp.allclose(out_chunk, expected, atol=3e-3, rtol=3e-3), err_chunk

    # TODO(synk): lora_dropout / attention dropout / attention masks are
    # identity/None in this (eval, CLIP) configuration and are not modeled.
    print("KERNEL_OK")
</pallas_src>

<mosaic_0001>
module attributes {stable_mosaic.version = 11 : i64} {
  func.func @kernel(%arg0: i32, %arg1: memref<1x8x32xf32, #tpu.memory_space<vmem>>, %arg2: memref<32x128xf32, #tpu.memory_space<vmem>>, %arg3: memref<1x128xf32, #tpu.memory_space<vmem>>, %arg4: memref<4x32xf32, #tpu.memory_space<vmem>>, %arg5: memref<4x32xf32, #tpu.memory_space<vmem>>, %arg6: memref<32x32xf32, #tpu.memory_space<vmem>>, %arg7: memref<1x32xf32, #tpu.memory_space<vmem>>, %arg8: memref<1x8x32xf32, #tpu.memory_space<vmem>>) attributes {dimension_semantics = [#tpu.dimension_semantics<parallel>], iteration_bounds = array<i64: 2>, scalar_prefetch = 0 : i64, scratch_operands = 0 : i64, tpu.core_type = #tpu.core_type<tc>, window_params = [{transform_indices = @transform_0, window_bounds = array<i64: 1, 8, 32>}, {pipeline_mode = #tpu.pipeline_mode<synchronous>, transform_indices = @transform_1, window_bounds = array<i64: 32, 128>}, {pipeline_mode = #tpu.pipeline_mode<synchronous>, transform_indices = @transform_2, window_bounds = array<i64: 1, 128>}, {pipeline_mode = #tpu.pipeline_mode<synchronous>, transform_indices = @transform_3, window_bounds = array<i64: 4, 32>}, {pipeline_mode = #tpu.pipeline_mode<synchronous>, transform_indices = @transform_4, window_bounds = array<i64: 4, 32>}, {pipeline_mode = #tpu.pipeline_mode<synchronous>, transform_indices = @transform_5, window_bounds = array<i64: 32, 32>}, {pipeline_mode = #tpu.pipeline_mode<synchronous>, transform_indices = @transform_6, window_bounds = array<i64: 1, 32>}, {transform_indices = @transform_7, window_bounds = array<i64: 1, 8, 32>}]} {
    %c0 = arith.constant 0 : index
    %c0_0 = arith.constant 0 : index
    %c0_1 = arith.constant 0 : index
    %0 = vector.load %arg1[%c0, %c0_0, %c0_1] : memref<1x8x32xf32, #tpu.memory_space<vmem>>, vector<1x8x32xf32>
    %1 = vector.shape_cast %0 : vector<1x8x32xf32> to vector<8x32xf32>
    %c0_2 = arith.constant 0 : index
    %c0_3 = arith.constant 0 : index
    %2 = vector.load %arg2[%c0_2, %c0_3] : memref<32x128xf32, #tpu.memory_space<vmem>>, vector<32x128xf32>
    %cst = arith.constant dense<0.000000e+00> : vector<8x128xf32>
    %3 = tpu.matmul %1, %2, %cst {dimension_numbers = #tpu.dot_dimension_numbers<[1], [0], [0], [1], [0, 0, 1, 1], [], []>} : vector<8x32xf32>, vector<32x128xf32>, vector<8x128xf32> -> vector<8x128xf32>
    %c0_4 = arith.constant 0 : index
    %c0_5 = arith.constant 0 : index
    %4 = vector.load %arg3[%c0_4, %c0_5] : memref<1x128xf32, #tpu.memory_space<vmem>>, vector<1x128xf32>
    %5 = vector.broadcast %4 : vector<1x128xf32> to vector<8x128xf32>
    %6 = arith.addf %3, %5 : vector<8x128xf32>
    %7 = vector.extract_strided_slice %6 {offsets = [0, 96], sizes = [8, 4], strides = [1, 1]} : vector<8x128xf32> to vector<8x4xf32>
    %8 = vector.extract_strided_slice %6 {offsets = [0, 100], sizes = [8, 4], strides = [1, 1]} : vector<8x128xf32> to vector<8x4xf32>
    %c0_6 = arith.constant 0 : index
    %c0_7 = arith.constant 0 : index
    %9 = vector.load %arg4[%c0_6, %c0_7] : memref<4x32xf32, #tpu.memory_space<vmem>>, vector<4x32xf32>
    %cst_8 = arith.constant dense<0.000000e+00> : vector<8x32xf32>
    %10 = tpu.matmul %7, %9, %cst_8 {dimension_numbers = #tpu.dot_dimension_numbers<[1], [0], [0], [1], [0, 0, 1, 1], [], []>} : vector<8x4xf32>, vector<4x32xf32>, vector<8x32xf32> -> vector<8x32xf32>
    %c0_9 = arith.constant 0 : index
    %c0_10 = arith.constant 0 : index
    %11 = vector.load %arg5[%c0_9, %c0_10] : memref<4x32xf32, #tpu.memory_space<vmem>>, vector<4x32xf32>
    %cst_11 = arith.constant dense<0.000000e+00> : vector<8x32xf32>
    %12 = tpu.matmul %8, %11, %cst_11 {dimension_numbers = #tpu.dot_dimension_numbers<[1], [0], [0], [1], [0, 0, 1, 1], [], []>} : vector<8x4xf32>, vector<4x32xf32>, vector<8x32xf32> -> vector<8x32xf32>
    %13 = vector.extract_strided_slice %6 {offsets = [0, 0], sizes = [8, 32], strides = [1, 1]} : vector<8x128xf32> to vector<8x32xf32>
    %14 = arith.addf %13, %10 : vector<8x32xf32>
    %15 = vector.extract_strided_slice %6 {offsets = [0, 32], sizes = [8, 32], strides = [1, 1]} : vector<8x128xf32> to vector<8x32xf32>
    %16 = vector.extract_strided_slice %6 {offsets = [0, 64], sizes = [8, 32], strides = [1, 1]} : vector<8x128xf32> to vector<8x32xf32>
    %17 = arith.addf %16, %12 : vector<8x32xf32>
    %18 = vector.shape_cast %14 : vector<8x32xf32> to vector<8x4x8xf32>
    %19 = tpu.transpose %18, [1, 0, 2] : vector<8x4x8xf32> -> vector<4x8x8xf32>
    %20 = vector.shape_cast %15 : vector<8x32xf32> to vector<8x4x8xf32>
    %21 = tpu.transpose %20, [1, 0, 2] : vector<8x4x8xf32> -> vector<4x8x8xf32>
    %22 = vector.shape_cast %17 : vector<8x32xf32> to vector<8x4x8xf32>
    %23 = tpu.transpose %22, [1, 0, 2] : vector<8x4x8xf32> -> vector<4x8x8xf32>
    "tpu.trace_start"() <{level = 10 : i32, message = "hqd,hkd->hqk"}> : () -> ()
    %cst_12 = arith.constant dense<0.000000e+00> : vector<4x8x8xf32>
    %24 = tpu.matmul %19, %21, %cst_12 {dimension_numbers = #tpu.dot_dimension_numbers<[2], [2], [1], [1], [0, 0, 0, 1, 1, 1], [0], [0]>} : vector<4x8x8xf32>, vector<4x8x8xf32>, vector<4x8x8xf32> -> vector<4x8x8xf32>
    "tpu.trace_stop"() : () -> ()
    %cst_13 = arith.constant dense<0xFF800000> : vector<4x8xf32>
    %25 = vector.multi_reduction <maximumf>, %24, %cst_13 [2] : vector<4x8x8xf32> to vector<4x8xf32>
    %26 = vector.shape_cast %25 : vector<4x8xf32> to vector<4x8x1xf32>
    %27 = vector.broadcast %26 : vector<4x8x1xf32> to vector<4x8x8xf32>
    %28 = arith.subf %24, %27 : vector<4x8x8xf32>
    %29 = math.exp %28 : vector<4x8x8xf32>
    %cst_14 = arith.constant dense<0.000000e+00> : vector<4x8xf32>
    %30 = vector.multi_reduction <add>, %29, %cst_14 [2] : vector<4x8x8xf32> to vector<4x8xf32>
    %31 = vector.shape_cast %30 : vector<4x8xf32> to vector<4x8x1xf32>
    "tpu.trace_start"() <{level = 10 : i32, message = "hqk,hkd->hqd"}> : () -> ()
    %cst_15 = arith.constant dense<0.000000e+00> : vector<4x8x8xf32>
    %32 = tpu.matmul %29, %23, %cst_15 {dimension_numbers = #tpu.dot_dimension_numbers<[2], [1], [1], [2], [0, 0, 0, 1, 1, 2], [0], [0]>} : vector<4x8x8xf32>, vector<4x8x8xf32>, vector<4x8x8xf32> -> vector<4x8x8xf32>
    "tpu.trace_stop"() : () -> ()
    %33 = tpu.reciprocal %31 {approx = true} : vector<4x8x1xf32> -> vector<4x8x1xf32>
    %34 = vector.broadcast %33 : vector<4x8x1xf32> to vector<4x8x8xf32>
    %35 = arith.mulf %32, %34 : vector<4x8x8xf32>
    %36 = tpu.transpose %35, [1, 0, 2] : vector<4x8x8xf32> -> vector<8x4x8xf32>
    %37 = vector.shape_cast %36 : vector<8x4x8xf32> to vector<8x32xf32>
    %c0_16 = arith.constant 0 : index
    %c0_17 = arith.constant 0 : index
    %38 = vector.load %arg6[%c0_16, %c0_17] : memref<32x32xf32, #tpu.memory_space<vmem>>, vector<32x32xf32>
    %cst_18 = arith.constant dense<0.000000e+00> : vector<8x32xf32>
    %39 = tpu.matmul %37, %38, %cst_18 {dimension_numbers = #tpu.dot_dimension_numbers<[1], [0], [0], [1], [0, 0, 1, 1], [], []>} : vector<8x32xf32>, vector<32x32xf32>, vector<8x32xf32> -> vector<8x32xf32>
    %c0_19 = arith.constant 0 : index
    %c0_20 = arith.constant 0 : index
    %40 = vector.load %arg7[%c0_19, %c0_20] : memref<1x32xf32, #tpu.memory_space<vmem>>, vector<1x32xf32>
    %41 = vector.broadcast %40 : vector<1x32xf32> to vector<8x32xf32>
    %42 = arith.addf %39, %41 : vector<8x32xf32>
    %c0_21 = arith.constant 0 : index
    %c0_22 = arith.constant 0 : index
    %c0_23 = arith.constant 0 : index
    %43 = vector.load %arg8[%c0_21, %c0_22, %c0_23] : memref<1x8x32xf32, #tpu.memory_space<vmem>>, vector<1x8x32xf32>
    %44 = vector.shape_cast %43 : vector<1x8x32xf32> to vector<8x32xf32>
    %45 = vector.shape_cast %42 : vector<8x32xf32> to vector<1x8x32xf32>
    tpu.vector_store %arg8[%c0_21, %c0_22, %c0_23], %45 {strides = array<i32>} : memref<1x8x32xf32, #tpu.memory_space<vmem>>, vector<1x8x32xf32>,
    return
  }
  func.func @transform_0(%arg0: i32) -> (i32, i32, i32) {
    %c0_i32 = arith.constant 0 : i32
    %c0_i32_0 = arith.constant 0 : i32
    %c0_i32_1 = arith.constant 0 : i32
    return %arg0, %c0_i32, %c0_i32_0 : i32, i32, i32
  }
  func.func @transform_1(%arg0: i32) -> (i32, i32) {
    %c0_i32 = arith.constant 0 : i32
    %c0_i32_0 = arith.constant 0 : i32
    %c0_i32_1 = arith.constant 0 : i32
    return %c0_i32, %c0_i32_0 : i32, i32
  }
  func.func @transform_2(%arg0: i32) -> (i32, i32) {
    %c0_i32 = arith.constant 0 : i32
    %c0_i32_0 = arith.constant 0 : i32
    %c0_i32_1 = arith.constant 0 : i32
    return %c0_i32, %c0_i32_0 : i32, i32
  }
  func.func @transform_3(%arg0: i32) -> (i32, i32) {
    %c0_i32 = arith.constant 0 : i32
    %c0_i32_0 = arith.constant 0 : i32
    %c0_i32_1 = arith.constant 0 : i32
    return %c0_i32, %c0_i32_0 : i32, i32
  }
  func.func @transform_4(%arg0: i32) -> (i32, i32) {
    %c0_i32 = arith.constant 0 : i32
    %c0_i32_0 = arith.constant 0 : i32
    %c0_i32_1 = arith.constant 0 : i32
    return %c0_i32, %c0_i32_0 : i32, i32
  }
  func.func @transform_5(%arg0: i32) -> (i32, i32) {
    %c0_i32 = arith.constant 0 : i32
    %c0_i32_0 = arith.constant 0 : i32
    %c0_i32_1 = arith.constant 0 : i32
    return %c0_i32, %c0_i32_0 : i32, i32
  }
  func.func @transform_6(%arg0: i32) -> (i32, i32) {
    %c0_i32 = arith.constant 0 : i32
    %c0_i32_0 = arith.constant 0 : i32
    %c0_i32_1 = arith.constant 0 : i32
    return %c0_i32, %c0_i32_0 : i32, i32
  }
  func.func @transform_7(%arg0: i32) -> (i32, i32, i32) {
    %c0_i32 = arith.constant 0 : i32
    %c0_i32_0 = arith.constant 0 : i32
    %c0_i32_1 = arith.constant 0 : i32
    return %arg0, %c0_i32, %c0_i32_0 : i32, i32, i32
  }
}

module attributes {stable_mosaic.version = 11 : i64} {
  func.func @kernel(%arg0: i32, %arg1: memref<1x8x32xf32, #tpu.memory_space<vmem>>, %arg2: memref<32x128xf32, #tpu.memory_space<vmem>>, %arg3: memref<1x128xf32, #tpu.memory_space<vmem>>, %arg4: memref<4x32xf32, #tpu.memory_space<vmem>>, %arg5: memref<4x32xf32, #tpu.memory_space<vmem>>, %arg6: memref<32x32xf32, #tpu.memory_space<vmem>>, %arg7: memref<1x32xf32, #tpu.memory_space<vmem>>, %arg8: memref<1x8x32xf32, #tpu.memory_space<vmem>>) attributes {dimension_semantics = [#tpu.dimension_semantics<parallel>], iteration_bounds = array<i64: 2>, scalar_prefetch = 0 : i64, scratch_operands = 0 : i64, tpu.core_type = #tpu.core_type<tc>, window_params = [{transform_indices = @transform_0, window_bounds = array<i64: 1, 8, 32>}, {pipeline_mode = #tpu.pipeline_mode<synchronous>, transform_indices = @transform_1, window_bounds = array<i64: 32, 128>}, {pipeline_mode = #tpu.pipeline_mode<synchronous>, transform_indices = @transform_2, window_bounds = array<i64: 1, 128>}, {pipeline_mode = #tpu.pipeline_mode<synchronous>, transform_indices = @transform_3, window_bounds = array<i64: 4, 32>}, {pipeline_mode = #tpu.pipeline_mode<synchronous>, transform_indices = @transform_4, window_bounds = array<i64: 4, 32>}, {pipeline_mode = #tpu.pipeline_mode<synchronous>, transform_indices = @transform_5, window_bounds = array<i64: 32, 32>}, {pipeline_mode = #tpu.pipeline_mode<synchronous>, transform_indices = @transform_6, window_bounds = array<i64: 1, 32>}, {transform_indices = @transform_7, window_bounds = array<i64: 1, 8, 32>}]} {
    %c0 = arith.constant 0 : index
    %c0_0 = arith.constant 0 : index
    %c0_1 = arith.constant 0 : index
    %0 = vector.load %arg1[%c0, %c0_0, %c0_1] : memref<1x8x32xf32, #tpu.memory_space<vmem>>, vector<1x8x32xf32>
    %1 = vector.shape_cast %0 : vector<1x8x32xf32> to vector<8x32xf32>
    %c0_2 = arith.constant 0 : index
    %c0_3 = arith.constant 0 : index
    %2 = vector.load %arg2[%c0_2, %c0_3] : memref<32x128xf32, #tpu.memory_space<vmem>>, vector<32x128xf32>
    %cst = arith.constant dense<0.000000e+00> : vector<8x128xf32>
    %3 = tpu.matmul %1, %2, %cst {dimension_numbers = #tpu.dot_dimension_numbers<[1], [0], [0], [1], [0, 0, 1, 1], [], []>} : vector<8x32xf32>, vector<32x128xf32>, vector<8x128xf32> -> vector<8x128xf32>
    %c0_4 = arith.constant 0 : index
    %c0_5 = arith.constant 0 : index
    %4 = vector.load %arg3[%c0_4, %c0_5] : memref<1x128xf32, #tpu.memory_space<vmem>>, vector<1x128xf32>
    %5 = vector.broadcast %4 : vector<1x128xf32> to vector<8x128xf32>
    %6 = arith.addf %3, %5 : vector<8x128xf32>
    %7 = vector.extract_strided_slice %6 {offsets = [0, 96], sizes = [8, 4], strides = [1, 1]} : vector<8x128xf32> to vector<8x4xf32>
    %8 = vector.extract_strided_slice %6 {offsets = [0, 100], sizes = [8, 4], strides = [1, 1]} : vector<8x128xf32> to vector<8x4xf32>
    %c0_6 = arith.constant 0 : index
    %c0_7 = arith.constant 0 : index
    %9 = vector.load %arg4[%c0_6, %c0_7] : memref<4x32xf32, #tpu.memory_space<vmem>>, vector<4x32xf32>
    %cst_8 = arith.constant dense<0.000000e+00> : vector<8x32xf32>
    %10 = tpu.matmul %7, %9, %cst_8 {dimension_numbers = #tpu.dot_dimension_numbers<[1], [0], [0], [1], [0, 0, 1, 1], [], []>} : vector<8x4xf32>, vector<4x32xf32>, vector<8x32xf32> -> vector<8x32xf32>
    %c0_9 = arith.constant 0 : index
    %c0_10 = arith.constant 0 : index
    %11 = vector.load %arg5[%c0_9, %c0_10] : memref<4x32xf32, #tpu.memory_space<vmem>>, vector<4x32xf32>
    %cst_11 = arith.constant dense<0.000000e+00> : vector<8x32xf32>
    %12 = tpu.matmul %8, %11, %cst_11 {dimension_numbers = #tpu.dot_dimension_numbers<[1], [0], [0], [1], [0, 0, 1, 1], [], []>} : vector<8x4xf32>, vector<4x32xf32>, vector<8x32xf32> -> vector<8x32xf32>
    %13 = vector.extract_strided_slice %6 {offsets = [0, 0], sizes = [8, 32], strides = [1, 1]} : vector<8x128xf32> to vector<8x32xf32>
    %14 = arith.addf %13, %10 : vector<8x32xf32>
    %15 = vector.extract_strided_slice %6 {offsets = [0, 32], sizes = [8, 32], strides = [1, 1]} : vector<8x128xf32> to vector<8x32xf32>
    %16 = vector.extract_strided_slice %6 {offsets = [0, 64], sizes = [8, 32], strides = [1, 1]} : vector<8x128xf32> to vector<8x32xf32>
    %17 = arith.addf %16, %12 : vector<8x32xf32>
    %18 = vector.shape_cast %14 : vector<8x32xf32> to vector<8x4x8xf32>
    %19 = tpu.transpose %18, [1, 0, 2] : vector<8x4x8xf32> -> vector<4x8x8xf32>
    %20 = vector.shape_cast %15 : vector<8x32xf32> to vector<8x4x8xf32>
    %21 = tpu.transpose %20, [1, 0, 2] : vector<8x4x8xf32> -> vector<4x8x8xf32>
    %22 = vector.shape_cast %17 : vector<8x32xf32> to vector<8x4x8xf32>
    %23 = tpu.transpose %22, [1, 0, 2] : vector<8x4x8xf32> -> vector<4x8x8xf32>
    "tpu.trace_start"() <{level = 10 : i32, message = "hqd,hkd->hqk"}> : () -> ()
    %cst_12 = arith.constant dense<0.000000e+00> : vector<4x8x8xf32>
    %24 = tpu.matmul %19, %21, %cst_12 {dimension_numbers = #tpu.dot_dimension_numbers<[2], [2], [1], [1], [0, 0, 0, 1, 1, 1], [0], [0]>} : vector<4x8x8xf32>, vector<4x8x8xf32>, vector<4x8x8xf32> -> vector<4x8x8xf32>
    "tpu.trace_stop"() : () -> ()
    %cst_13 = arith.constant dense<0xFF800000> : vector<4x8xf32>
    %25 = vector.multi_reduction <maximumf>, %24, %cst_13 [2] : vector<4x8x8xf32> to vector<4x8xf32>
    %26 = vector.shape_cast %25 : vector<4x8xf32> to vector<4x8x1xf32>
    %27 = vector.broadcast %26 : vector<4x8x1xf32> to vector<4x8x8xf32>
    %28 = arith.subf %24, %27 : vector<4x8x8xf32>
    %29 = math.exp %28 : vector<4x8x8xf32>
    %cst_14 = arith.constant dense<0.000000e+00> : vector<4x8xf32>
    %30 = vector.multi_reduction <add>, %29, %cst_14 [2] : vector<4x8x8xf32> to vector<4x8xf32>
    %31 = vector.shape_cast %30 : vector<4x8xf32> to vector<4x8x1xf32>
    "tpu.trace_start"() <{level = 10 : i32, message = "hqk,hkd->hqd"}> : () -> ()
    %cst_15 = arith.constant dense<0.000000e+00> : vector<4x8x8xf32>
    %32 = tpu.matmul %29, %23, %cst_15 {dimension_numbers = #tpu.dot_dimension_numbers<[2], [1], [1], [2], [0, 0, 0, 1, 1, 2], [0], [0]>} : vector<4x8x8xf32>, vector<4x8x8xf32>, vector<4x8x8xf32> -> vector<4x8x8xf32>
    "tpu.trace_stop"() : () -> ()
    %33 = tpu.reciprocal %31 {approx = true} : vector<4x8x1xf32> -> vector<4x8x1xf32>
    %34 = vector.broadcast %33 : vector<4x8x1xf32> to vector<4x8x8xf32>
    %35 = arith.mulf %32, %34 : vector<4x8x8xf32>
    %36 = tpu.transpose %35, [1, 0, 2] : vector<4x8x8xf32> -> vector<8x4x8xf32>
    %37 = vector.shape_cast %36 : vector<8x4x8xf32> to vector<8x32xf32>
    %c0_16 = arith.constant 0 : index
    %c0_17 = arith.constant 0 : index
    %38 = vector.load %arg6[%c0_16, %c0_17] : memref<32x32xf32, #tpu.memory_space<vmem>>, vector<32x32xf32>
    %cst_18 = arith.constant dense<0.000000e+00> : vector<8x32xf32>
    %39 = tpu.matmul %37, %38, %cst_18 {dimension_numbers = #tpu.dot_dimension_numbers<[1], [0], [0], [1], [0, 0, 1, 1], [], []>} : vector<8x32xf32>, vector<32x32xf32>, vector<8x32xf32> -> vector<8x32xf32>
    %c0_19 = arith.constant 0 : index
    %c0_20 = arith.constant 0 : index
    %40 = vector.load %arg7[%c0_19, %c0_20] : memref<1x32xf32, #tpu.memory_space<vmem>>, vector<1x32xf32>
    %41 = vector.broadcast %40 : vector<1x32xf32> to vector<8x32xf32>
    %42 = arith.addf %39, %41 : vector<8x32xf32>
    %c0_21 = arith.constant 0 : index
    %c0_22 = arith.constant 0 : index
    %c0_23 = arith.constant 0 : index
    %43 = vector.load %arg8[%c0_21, %c0_22, %c0_23] : memref<1x8x32xf32, #tpu.memory_space<vmem>>, vector<1x8x32xf32>
    %44 = vector.shape_cast %43 : vector<1x8x32xf32> to vector<8x32xf32>
    %45 = vector.shape_cast %42 : vector<8x32xf32> to vector<1x8x32xf32>
    tpu.vector_store %arg8[%c0_21, %c0_22, %c0_23], %45 {strides = array<i32>} : memref<1x8x32xf32, #tpu.memory_space<vmem>>, vector<1x8x32xf32>,
    return
  }
  func.func @transform_0(%arg0: i32) -> (i32, i32, i32) {
    %c0_i32 = arith.constant 0 : i32
    %c0_i32_0 = arith.constant 0 : i32
    %c0_i32_1 = arith.constant 0 : i32
    return %arg0, %c0_i32, %c0_i32_0 : i32, i32, i32
  }
  func.func @transform_1(%arg0: i32) -> (i32, i32) {
    %c0_i32 = arith.constant 0 : i32
    %c0_i32_0 = arith.constant 0 : i32
    %c0_i32_1 = arith.constant 0 : i32
    return %c0_i32, %c0_i32_0 : i32, i32
  }
  func.func @transform_2(%arg0: i32) -> (i32, i32) {
    %c0_i32 = arith.constant 0 : i32
    %c0_i32_0 = arith.constant 0 : i32
    %c0_i32_1 = arith.constant 0 : i32
    return %c0_i32, %c0_i32_0 : i32, i32
  }
  func.func @transform_3(%arg0: i32) -> (i32, i32) {
    %c0_i32 = arith.constant 0 : i32
    %c0_i32_0 = arith.constant 0 : i32
    %c0_i32_1 = arith.constant 0 : i32
    return %c0_i32, %c0_i32_0 : i32, i32
  }
  func.func @transform_4(%arg0: i32) -> (i32, i32) {
    %c0_i32 = arith.constant 0 : i32
    %c0_i32_0 = arith.constant 0 : i32
    %c0_i32_1 = arith.constant 0 : i32
    return %c0_i32, %c0_i32_0 : i32, i32
  }
  func.func @transform_5(%arg0: i32) -> (i32, i32) {
    %c0_i32 = arith.constant 0 : i32
    %c0_i32_0 = arith.constant 0 : i32
    %c0_i32_1 = arith.constant 0 : i32
    return %c0_i32, %c0_i32_0 : i32, i32
  }
  func.func @transform_6(%arg0: i32) -> (i32, i32) {
    %c0_i32 = arith.constant 0 : i32
    %c0_i32_0 = arith.constant 0 : i32
    %c0_i32_1 = arith.constant 0 : i32
    return %c0_i32, %c0_i32_0 : i32, i32
  }
  func.func @transform_7(%arg0: i32) -> (i32, i32, i32) {
    %c0_i32 = arith.constant 0 : i32
    %c0_i32_0 = arith.constant 0 : i32
    %c0_i32_1 = arith.constant 0 : i32
    return %arg0, %c0_i32, %c0_i32_0 : i32, i32, i32
  }
}

</mosaic_0001>

<llo_original>
// kernel: tpu_custom_call.1
$region0: #{tpu_custom_call.1}
  #allocation0 [shape = 'u32[]', space=smem, size = 0x4, offset = 0x4, fixed_abs, tag = 'smem constant byte address 0x4 - core index']
  #allocation1 [shape = 'u32[72,128]{1,0:T(1,128)}', space=vmem, size = 0x9000, scoped, tag = 'internal scratch']
  %s0 = inlined_call_operand.hbm [shape: f32[2,8,32], index: 0, kind: input, shape index: {}]
  %s1 = inlined_call_operand.hbm [shape: f32[32,128], index: 1, kind: input, shape index: {}]
  %s2 = inlined_call_operand.vmem [shape: f32[1,128], index: 2, kind: input, shape index: {}]
  %s3 = inlined_call_operand.hbm [shape: f32[4,32], index: 3, kind: input, shape index: {}]
  %s4 = inlined_call_operand.hbm [shape: f32[4,32], index: 4, kind: input, shape index: {}]
  %s5 = inlined_call_operand.hbm [shape: f32[32,32], index: 5, kind: input, shape index: {}]
  %s6 = inlined_call_operand.vmem [shape: f32[1,32], index: 6, kind: input, shape index: {}]
  %s7 = inlined_call_operand.hbm [shape: f32[2,8,32], index: 7, kind: output, shape index: {}]
  %s8 = sld [smem:[#allocation0]]
  $region81: #{tpu_custom_call.1} parent=0
    _
  %s10 = ssub.s32 1, %s8
  %s11 = scalar_select 0, %s10, %s8
  $region1: #{tpu_custom_call.1} parent=0
    #allocation2 [shape = 'u8[8192]{0}', space=vmem, size = 0x2000, scoped, tag = 'input window, operand 0']
    #allocation3 [shape = 's32[2]{0}', space=sflag, size = 0x8, scoped, tag = 'scoped memory for tpu_custom_call.1']
    #allocation4 [shape = 's32[2]{0}', space=sflag, size = 0x8, scoped, tag = 'scoped memory for tpu_custom_call.1']
    #allocation5 [shape = 'u8[16384]{0}', space=vmem, size = 0x4000, scoped, tag = 'input window, operand 1, single buffered']
    #allocation6 [shape = 's32[1]{0}', space=sflag, size = 0x4, scoped, tag = 'scoped memory for tpu_custom_call.1']
    #allocation7 [shape = 'u8[2048]{0}', space=vmem, size = 0x800, scoped, tag = 'input window, operand 3, single buffered']
    #allocation8 [shape = 'u8[2048]{0}', space=vmem, size = 0x800, scoped, tag = 'input window, operand 4, single buffered']
    #allocation9 [shape = 's32[1]{0}', space=sflag, size = 0x4, scoped, tag = 'scoped memory for tpu_custom_call.1']
    #allocation10 [shape = 'u8[16384]{0}', space=vmem, size = 0x4000, scoped, tag = 'input window, operand 5, single buffered']
    #allocation11 [shape = 'u8[8192]{0}', space=vmem, size = 0x2000, scoped, tag = 'output window, operand 0']
    %12 = vsyncpa [#allocation3], 0
    %s13 = scalar_lea.sflag [#allocation3], 1
    %14 = vsyncpa %s13, 0
    %15 = vsyncpa [#allocation6], 0
    %16 = vsyncpa [#allocation9], 0
    %17 = vsyncpa [#allocation4], 0
    %s18 = scalar_lea.sflag [#allocation4], 1
    %19 = vsyncpa %s18, 0
    loop: start=0, step=1, limit=4
    $region2: #{tpu_custom_call.1} parent=1 // loop_pre_header
      _
    $region3: #{tpu_custom_call.1} parent=1 // loop_header
      %s21 = sphi 0, %s25
      %p22 = scmp.ge.s32.totalorder %s21, 4
      %s31 = sphi 0, %s33
      %s34 = sphi 0, %s31
      %s35 = sphi 0, %s34
      %s51 = sphi 0, %s35
      %s55 = sphi 0, %s55
      %s57 = sphi 0, %s55
      %s58 = sphi 0, %s57
      %s72 = sphi 0, %s58
      %s76 = sphi 0, %s76
      %s78 = sphi 0, %s76
      %s79 = sphi 0, %s78
      %s93 = sphi 0, %s79
      %s97 = sphi 0, %s97
      %s99 = sphi 0, %s97
      %s100 = sphi 0, %s99
      %s114 = sphi 0, %s100
      %s118 = sphi 0, %s118
      %s120 = sphi 0, %s118
      %s121 = sphi 0, %s120
      %s135 = sphi 0, %s121
      %s139 = sphi 0, %s139
      %s141 = sphi 0, %s139
      %s142 = sphi 0, %s141
      %s156 = sphi 0, %s142
      %s160 = sphi 0, %s160
      %s162 = sphi 0, %s160
      %s163 = sphi 0, %s162
      %s177 = sphi 0, %s163
      %s183 = sphi 0, %s185
      %s186 = sphi 0, %s183
      %s187 = sphi 0, %s186
      %s203 = sphi 0, %s187
    $region4: #{tpu_custom_call.1} parent=1 // loop_header_branch
      %24 = sbr.rel (%p22) target = $region8
    $region5: #{tpu_custom_call.1} parent=1 // loop_body
      %s26 = ssub.s32 %s21, 1
      %s27 = ssub.s32 %s21, 2
      %s28 = sadd.s32 %s21, 1
      %s29 = ssub.s32 %s21, %s28
      %p30 = scmp.eq.s32.totalorder %s29, 0
      %s32 = sadd.s32 %s31, 1
      %s33 = scalar_select %p30, %s31, %s32
      %p36 = pneg %p30
      %p37 = scmp.eq.s32.totalorder %s21, 1
      %p38 = por %p36, %p37
      %p39 = scmp.ne.s32.totalorder %s31, %s34
      %p40 = scmp.eq.s32.totalorder %s21, 0
      %p41 = por %p39, %p40
      %p42 = scmp.ne.s32.totalorder %s31, %s34
      %p43 = scmp.eq.s32.totalorder %s26, 1
      %p44 = por %p42, %p43
      %p45 = scmp.ne.s32.totalorder %s34, %s35
      %p46 = scmp.eq.s32.totalorder %s26, 0
      %p47 = por %p45, %p46
      %p48 = scmp.ne.s32.totalorder %s34, %s35
      %p49 = scmp.eq.s32.totalorder %s27, 1
      %p50 = por %p48, %p49
      %p52 = scmp.ne.s32.totalorder %s35, %s51
      %p53 = scmp.eq.s32.totalorder %s27, 0
      %p54 = por %p52, %p53
      %s56 = sadd.s32 %s55, 1
      %p59 = scmp.eq.s32.totalorder %s21, 1
      %p60 = scmp.ne.s32.totalorder %s55, %s57
      %p61 = scmp.eq.s32.totalorder %s21, 0
      %p62 = por %p60, %p61
      %p63 = scmp.ne.s32.totalorder %s55, %s57
      %p64 = scmp.eq.s32.totalorder %s26, 1
      %p65 = por %p63, %p64
      %p66 = scmp.ne.s32.totalorder %s57, %s58
      %p67 = scmp.eq.s32.totalorder %s26, 0
      %p68 = por %p66, %p67
      %p69 = scmp.ne.s32.totalorder %s57, %s58
      %p70 = scmp.eq.s32.totalorder %s27, 1
      %p71 = por %p69, %p70
      %p73 = scmp.ne.s32.totalorder %s58, %s72
      %p74 = scmp.eq.s32.totalorder %s27, 0
      %p75 = por %p73, %p74
      %s77 = sadd.s32 %s76, 1
      %p80 = scmp.eq.s32.totalorder %s21, 1
      %p81 = scmp.ne.s32.totalorder %s76, %s78
      %p82 = scmp.eq.s32.totalorder %s21, 0
      %p83 = por %p81, %p82
      %p84 = scmp.ne.s32.totalorder %s76, %s78
      %p85 = scmp.eq.s32.totalorder %s26, 1
      %p86 = por %p84, %p85
      %p87 = scmp.ne.s32.totalorder %s78, %s79
      %p88 = scmp.eq.s32.totalorder %s26, 0
      %p89 = por %p87, %p88
      %p90 = scmp.ne.s32.totalorder %s78, %s79
      %p91 = scmp.eq.s32.totalorder %s27, 1
      %p92 = por %p90, %p91
      %p94 = scmp.ne.s32.totalorder %s79, %s93
      %p95 = scmp.eq.s32.totalorder %s27, 0
      %p96 = por %p94, %p95
      %s98 = sadd.s32 %s97, 1
      %p101 = scmp.eq.s32.totalorder %s21, 1
      %p102 = scmp.ne.s32.totalorder %s97, %s99
      %p103 = scmp.eq.s32.totalorder %s21, 0
      %p104 = por %p102, %p103
      %p105 = scmp.ne.s32.totalorder %s97, %s99
      %p106 = scmp.eq.s32.totalorder %s26, 1
      %p107 = por %p105, %p106
      %p108 = scmp.ne.s32.totalorder %s99, %s100
      %p109 = scmp.eq.s32.totalorder %s26, 0
      %p110 = por %p108, %p109
      %p111 = scmp.ne.s32.totalorder %s99, %s100
      %p112 = scmp.eq.s32.totalorder %s27, 1
      %p113 = por %p111, %p112
      %p115 = scmp.ne.s32.totalorder %s100, %s114
      %p116 = scmp.eq.s32.totalorder %s27, 0
      %p117 = por %p115, %p116
      %s119 = sadd.s32 %s118, 1
      %p122 = scmp.eq.s32.totalorder %s21, 1
      %p123 = scmp.ne.s32.totalorder %s118, %s120
      %p124 = scmp.eq.s32.totalorder %s21, 0
      %p125 = por %p123, %p124
      %p126 = scmp.ne.s32.totalorder %s118, %s120
      %p127 = scmp.eq.s32.totalorder %s26, 1
      %p128 = por %p126, %p127
      %p129 = scmp.ne.s32.totalorder %s120, %s121
      %p130 = scmp.eq.s32.totalorder %s26, 0
      %p131 = por %p129, %p130
      %p132 = scmp.ne.s32.totalorder %s120, %s121
      %p133 = scmp.eq.s32.totalorder %s27, 1
      %p134 = por %p132, %p133
      %p136 = scmp.ne.s32.totalorder %s121, %s135
      %p137 = scmp.eq.s32.totalorder %s27, 0
      %p138 = por %p136, %p137
      %s140 = sadd.s32 %s139, 1
      %p143 = scmp.eq.s32.totalorder %s21, 1
      %p144 = scmp.ne.s32.totalorder %s139, %s141
      %p145 = scmp.eq.s32.totalorder %s21, 0
      %p146 = por %p144, %p145
      %p147 = scmp.ne.s32.totalorder %s139, %s141
      %p148 = scmp.eq.s32.totalorder %s26, 1
      %p149 = por %p147, %p148
      %p150 = scmp.ne.s32.totalorder %s141, %s142
      %p151 = scmp.eq.s32.totalorder %s26, 0
      %p152 = por %p150, %p151
      %p153 = scmp.ne.s32.totalorder %s141, %s142
      %p154 = scmp.eq.s32.totalorder %s27, 1
      %p155 = por %p153, %p154
      %p157 = scmp.ne.s32.totalorder %s142, %s156
      %p158 = scmp.eq.s32.totalorder %s27, 0
      %p159 = por %p157, %p158
      %s161 = sadd.s32 %s160, 1
      %p164 = scmp.eq.s32.totalorder %s21, 1
      %p165 = scmp.ne.s32.totalorder %s160, %s162
      %p166 = scmp.eq.s32.totalorder %s21, 0
      %p167 = por %p165, %p166
      %p168 = scmp.ne.s32.totalorder %s160, %s162
      %p169 = scmp.eq.s32.totalorder %s26, 1
      %p170 = por %p168, %p169
      %p171 = scmp.ne.s32.totalorder %s162, %s163
      %p172 = scmp.eq.s32.totalorder %s26, 0
      %p173 = por %p171, %p172
      %p174 = scmp.ne.s32.totalorder %s162, %s163
      %p175 = scmp.eq.s32.totalorder %s27, 1
      %p176 = por %p174, %p175
      %p178 = scmp.ne.s32.totalorder %s163, %s177
      %p179 = scmp.eq.s32.totalorder %s27, 0
      %p180 = por %p178, %p179
      %s181 = ssub.s32 %s21, %s28
      %p182 = scmp.eq.s32.totalorder %s181, 0
      %s184 = sadd.s32 %s183, 1
      %s185 = scalar_select %p182, %s183, %s184
      %p188 = pneg %p182
      %p189 = scmp.eq.s32.totalorder %s21, 1
      %p190 = por %p188, %p189
      %p191 = scmp.ne.s32.totalorder %s183, %s186
      %p192 = scmp.eq.s32.totalorder %s21, 0
      %p193 = por %p191, %p192
      %p194 = scmp.ne.s32.totalorder %s183, %s186
      %p195 = scmp.eq.s32.totalorder %s26, 1
      %p196 = por %p194, %p195
      %p197 = scmp.ne.s32.totalorder %s186, %s187
      %p198 = scmp.eq.s32.totalorder %s26, 0
      %p199 = por %p197, %p198
      %p200 = scmp.ne.s32.totalorder %s186, %s187
      %p201 = scmp.eq.s32.totalorder %s27, 1
      %p202 = por %p200, %p201
      %p204 = scmp.ne.s32.totalorder %s187, %s203
      %p205 = scmp.eq.s32.totalorder %s27, 0
      %p206 = por %p204, %p205
      %p207 = scmp.le.s32.totalorder 1, %s21
      %p208 = scmp.lt.s32.totalorder %s21, 3
      %p209 = pnand %p207, %p208
      %p210 = pneg %p209
      // Predicated region
      $region9: #{tpu_custom_call.1} parent=5 // pred_check
        _
      $region10: #{tpu_custom_call.1} parent=5 // pred_check_branch
        %212 = sbr.rel (%p209) target = $region12
      $region11: #{tpu_custom_call.1} parent=5 // pred_region
        %s213 = ssub.s32 %s21, 1
        // Predicated region
        $region13: #{tpu_custom_call.1} parent=11 // pred_check
          %p214 = pneg %p68
        $region14: #{tpu_custom_call.1} parent=11 // pred_check_branch
          %216 = sbr.rel (%p214) target = $region16
        $region15: #{tpu_custom_call.1} parent=11 // pred_region
          %218 = vsyncadd [#allocation6], 0
          %s219 = sshll.u32 %s1, 4
          %s220 = int_to_ptr.hbm [resolvable:$true] %s219
          %s221 = sshll.u32 [#allocation5], 4
          %s222 = int_to_ptr.vmem [resolvable:$true] %s221
          %227 = dma.hbm_to_vmem [thread:$0]  %s220, 512, %s222, [#allocation6], 128, 128, 8
        $region16: #{tpu_custom_call.1} parent=11 // pred_fallthru
          _
        // Predicated region
        $region17: #{tpu_custom_call.1} parent=11 // pred_check
          %p228 = pneg %p89
        $region18: #{tpu_custom_call.1} parent=11 // pred_check_branch
          %230 = sbr.rel (%p228) target = $region20
        $region19: #{tpu_custom_call.1} parent=11 // pred_region
          _
        $region20: #{tpu_custom_call.1} parent=11 // pred_fallthru
          _
        // Predicated region
        $region21: #{tpu_custom_call.1} parent=11 // pred_check
          %p231 = pneg %p110
        $region22: #{tpu_custom_call.1} parent=11 // pred_check_branch
          %233 = sbr.rel (%p231) target = $region24
        $region23: #{tpu_custom_call.1} parent=11 // pred_region
          %235 = vsyncadd [#allocation6], 0
          %s237 = sshll.u32 %s3, 4
          %s238 = int_to_ptr.hbm [resolvable:$true] %s237
          %s239 = sshll.u32 [#allocation7], 4
          %s240 = int_to_ptr.vmem [resolvable:$true] %s239
          %242 = dma.hbm_to_vmem [thread:$0]  %s238, 64, %s240, [#allocation6]
        $region24: #{tpu_custom_call.1} parent=11 // pred_fallthru
          _
        // Predicated region
        $region25: #{tpu_custom_call.1} parent=11 // pred_check
          %p243 = pneg %p131
        $region26: #{tpu_custom_call.1} parent=11 // pred_check_branch
          %245 = sbr.rel (%p243) target = $region28
        $region27: #{tpu_custom_call.1} parent=11 // pred_region
          %247 = vsyncadd [#allocation9], 0
          %s249 = sshll.u32 %s4, 4
          %s250 = int_to_ptr.hbm [resolvable:$true] %s249
          %s251 = sshll.u32 [#allocation8], 4
          %s252 = int_to_ptr.vmem [resolvable:$true] %s251
          %254 = dma.hbm_to_vmem [thread:$0]  %s250, 64, %s252, [#allocation9]
        $region28: #{tpu_custom_call.1} parent=11 // pred_fallthru
          _
        // Predicated region
        $region29: #{tpu_custom_call.1} parent=11 // pred_check
          %p255 = pneg %p152
        $region30: #{tpu_custom_call.1} parent=11 // pred_check_branch
          %257 = sbr.rel (%p255) target = $region32
        $region31: #{tpu_custom_call.1} parent=11 // pred_region
          %259 = vsyncadd [#allocation9], 0
          %s260 = sshll.u32 %s5, 4
          %s261 = int_to_ptr.hbm [resolvable:$true] %s260
          %s262 = sshll.u32 [#allocation10], 4
          %s263 = int_to_ptr.vmem [resolvable:$true] %s262
          %268 = dma.hbm_to_vmem [thread:$0]  %s261, 512, %s263, [#allocation9], 128, 128, 8
        $region32: #{tpu_custom_call.1} parent=11 // pred_fallthru
          _
        // Predicated region
        $region33: #{tpu_custom_call.1} parent=11 // pred_check
          %p269 = pneg %p173
        $region34: #{tpu_custom_call.1} parent=11 // pred_check_branch
          %271 = sbr.rel (%p269) target = $region36
        $region35: #{tpu_custom_call.1} parent=11 // pred_region
          _
        $region36: #{tpu_custom_call.1} parent=11 // pred_fallthru
          _
      $region12: #{tpu_custom_call.1} parent=5 // pred_fallthru
        _
      %p272 = scmp.lt.s32.totalorder %s21, 2
      // Predicated region
      $region37: #{tpu_custom_call.1} parent=5 // pred_check
        %p273 = pneg %p272
      $region38: #{tpu_custom_call.1} parent=5 // pred_check_branch
        %275 = sbr.rel (%p273) target = $region40
      $region39: #{tpu_custom_call.1} parent=5 // pred_region
        // Predicated region
        $region41: #{tpu_custom_call.1} parent=39 // pred_check
          %p276 = pneg %p41
        $region42: #{tpu_custom_call.1} parent=39 // pred_check_branch
          %278 = sbr.rel (%p276) target = $region44
        $region43: #{tpu_custom_call.1} parent=39 // pred_region
          %s279 = sand.u32 %s31, 1
          %s280 = scalar_lea.sflag [#allocation3], %s279
          %s281 = sand.u32 %s31, 1
          %s282 = smul.addr %s281, 8
          %s283 = scalar_lea.vmem [#allocation2], %s282
          %285 = vsyncadd %s280, 0
          %s286 = smul.addr %s21, 8
          %s287 = scalar_lea.hbm %s0, %s286
          %s289 = sshll.u32 %s287, 4
          %s290 = int_to_ptr.hbm [resolvable:$true] %s289
          %s291 = sshll.u32 %s283, 4
          %s292 = int_to_ptr.vmem [resolvable:$true] %s291
          %294 = dma.hbm_to_vmem [thread:$0]  %s290, 128, %s292, %s280
        $region44: #{tpu_custom_call.1} parent=39 // pred_fallthru
          _
      $region40: #{tpu_custom_call.1} parent=5 // pred_fallthru
        _
      %p295 = scmp.le.s32.totalorder 1, %s21
      %p296 = scmp.lt.s32.totalorder %s21, 3
      %p297 = pnand %p295, %p296
      %p298 = pneg %p297
      // Predicated region
      $region45: #{tpu_custom_call.1} parent=5 // pred_check
        _
      $region46: #{tpu_custom_call.1} parent=5 // pred_check_branch
        %300 = sbr.rel (%p297) target = $region48
      $region47: #{tpu_custom_call.1} parent=5 // pred_region
        %s301 = ssub.s32 %s21, 1
        %s302 = sand.u32 %s34, 1
        %s303 = scalar_lea.sflag [#allocation3], %s302
        %s304 = sand.u32 %s34, 1
        %s305 = smul.addr %s304, 8
        %s306 = scalar_lea.vmem [#allocation2], %s305
        // Predicated region
        $region49: #{tpu_custom_call.1} parent=47 // pred_check
          %p307 = pneg %p47
        $region50: #{tpu_custom_call.1} parent=47 // pred_check_branch
          %309 = sbr.rel (%p307) target = $region52
        $region51: #{tpu_custom_call.1} parent=47 // pred_region
          %311 = dma.done %s303, 128
        $region52: #{tpu_custom_call.1} parent=47 // pred_fallthru
          _
        // Predicated region
        $region53: #{tpu_custom_call.1} parent=47 // pred_check
          %p312 = pneg %p68
        $region54: #{tpu_custom_call.1} parent=47 // pred_check_branch
          %314 = sbr.rel (%p312) target = $region56
        $region55: #{tpu_custom_call.1} parent=47 // pred_region
          %316 = dma.done [#allocation6], 512
        $region56: #{tpu_custom_call.1} parent=47 // pred_fallthru
          _
        // Predicated region
        $region57: #{tpu_custom_call.1} parent=47 // pred_check
          %p317 = pneg %p110
        $region58: #{tpu_custom_call.1} parent=47 // pred_check_branch
          %319 = sbr.rel (%p317) target = $region60
        $region59: #{tpu_custom_call.1} parent=47 // pred_region
          %321 = dma.done [#allocation6], 64
        $region60: #{tpu_custom_call.1} parent=47 // pred_fallthru
          _
        // Predicated region
        $region61: #{tpu_custom_call.1} parent=47 // pred_check
          %p322 = pneg %p131
        $region62: #{tpu_custom_call.1} parent=47 // pred_check_branch
          %324 = sbr.rel (%p322) target = $region64
        $region63: #{tpu_custom_call.1} parent=47 // pred_region
          %326 = dma.done [#allocation9], 64
        $region64: #{tpu_custom_call.1} parent=47 // pred_fallthru
          _
        // Predicated region
        $region65: #{tpu_custom_call.1} parent=47 // pred_check
          %p327 = pneg %p152
        $region66: #{tpu_custom_call.1} parent=47 // pred_check_branch
          %329 = sbr.rel (%p327) target = $region68
        $region67: #{tpu_custom_call.1} parent=47 // pred_region
          %331 = dma.done [#allocation9], 512
        $region68: #{tpu_custom_call.1} parent=47 // pred_fallthru
          _
        %s332 = sand.u32 %s34, 1
        %s333 = scalar_lea.sflag [#allocation3], %s332
        %s334 = sand.u32 %s34, 1
        %s335 = smul.addr %s334, 8
        %s336 = scalar_lea.vmem [#allocation2], %s335
        %p337 = pneg %p47
        %p338 = pneg %p44
        %p339 = pneg %p68
        %p340 = pneg %p65
        %p341 = pneg %p89
        %p342 = pneg %p86
        %p343 = pneg %p110
        %p344 = pneg %p107
        %p345 = pneg %p131
        %p346 = pneg %p128
        %p347 = pneg %p152
        %p348 = pneg %p149
        %p349 = pneg %p173
        %p350 = pneg %p170
        %p351 = pneg %p199
        %p352 = pneg %p196
        %s353 = sand.u32 %s186, 1
        %s354 = scalar_lea.sflag [#allocation4], %s353
        %s355 = sand.u32 %s186, 1
        %s356 = smul.addr %s355, 8
        %s357 = scalar_lea.vmem [#allocation11], %s356
        %v358 = vld [vmem:[%s306] sm:$0xff]
        %v359 = vld [vmem:[#allocation5] sm:$0xff]
        %v360 = vld [vmem:[#allocation5 + $0x8] sm:$0xff]
        %v361 = vld [vmem:[#allocation5 + $0x10] sm:$0xff]
        %v362 = vld [vmem:[#allocation5 + $0x18] sm:$0xff]
        %v363 = vld [vmem:[%s2] sm:$0x1]
        %v365 = vperm.slane %v363, 0
        %vm367 = vcmask 261120
        %v369 = vsel %vm367, %v358, 0
        %371 = vmatpush.msra.mxu0 0.0
        %372 = vmatpush.msra.mxu0 0.0
        %373 = vmatpush.msra.mxu0 0.0
        %374 = vmatpush.msra.mxu0 0.0
        %375 = vmatpush.msra.mxu0 0.0
        %376 = vmatpush.msra.mxu0 0.0
        %377 = vmatpush.msra.mxu0 0.0
        %378 = vmatpush.msra.mxu0 0.0
        %379 = vmatpush.msra.mxu0 0.0
        %380 = vmatpush.msra.mxu0 0.0
        %381 = vmatpush.msra.mxu0 0.0
        %382 = vmatpush.msra.mxu0 0.0
        %383 = vmatpush.msra.mxu0 %v362
        %384 = vmatpush.msra.mxu0 %v361
        %385 = vmatpush.msra.mxu0 %v360
        %386 = vmatpush.msra.mxu0 %v359
        %387 = vmatmul.f32.gmra.mxu0 %v369
        %v388 = vpop.f32.mrf.mxu0
        %v389 = vadd.f32 %v365, %v388
        %390 = vdwg.mxu0
        %v391 = vld [vmem:[#allocation7] sm:$0xf]
        %393 = vrot.lane.b32.xlu0 %v389, 32
        %v394 = vpop.permute.xlu0 %393
        %vm395 = vcmask 31744
        %v396 = vsel %vm395, %v394, 0
        %vm398 = vcmask 1043456
        %v400 = vsel %vm398, %v391, 0
        %402 = vmatpush.msra.mxu0 0.0
        %403 = vmatpush.msra.mxu0 0.0
        %404 = vmatpush.msra.mxu0 0.0
        %405 = vmatpush.msra.mxu0 0.0
        %406 = vmatpush.msra.mxu0 0.0
        %407 = vmatpush.msra.mxu0 0.0
        %408 = vmatpush.msra.mxu0 0.0
        %409 = vmatpush.msra.mxu0 0.0
        %410 = vmatpush.msra.mxu0 0.0
        %411 = vmatpush.msra.mxu0 0.0
        %412 = vmatpush.msra.mxu0 0.0
        %413 = vmatpush.msra.mxu0 0.0
        %414 = vmatpush.msra.mxu0 0.0
        %415 = vmatpush.msra.mxu0 0.0
        %416 = vmatpush.msra.mxu0 0.0
        %417 = vmatpush.msra.mxu0 %v400
        %418 = vmatmul.f32.gmra.mxu0 %v396
        %v419 = vpop.f32.mrf.mxu0
        %v420 = vadd.f32 0.0, %v419
        %421 = vdwg.mxu0
        %v422 = vld [vmem:[#allocation8] sm:$0xf]
        %423 = vrot.lane.b32.xlu0 %v389, 28
        %v424 = vpop.permute.xlu0 %423
        %v425 = vsel %vm395, %v424, 0
        %v428 = vsel %vm398, %v422, 0
        %430 = vmatpush.msra.mxu0 0.0
        %431 = vmatpush.msra.mxu0 0.0
        %432 = vmatpush.msra.mxu0 0.0
        %433 = vmatpush.msra.mxu0 0.0
        %434 = vmatpush.msra.mxu0 0.0
        %435 = vmatpush.msra.mxu0 0.0
        %436 = vmatpush.msra.mxu0 0.0
        %437 = vmatpush.msra.mxu0 0.0
        %438 = vmatpush.msra.mxu0 0.0
        %439 = vmatpush.msra.mxu0 0.0
        %440 = vmatpush.msra.mxu0 0.0
        %441 = vmatpush.msra.mxu0 0.0
        %442 = vmatpush.msra.mxu0 0.0
        %443 = vmatpush.msra.mxu0 0.0
        %444 = vmatpush.msra.mxu0 0.0
        %445 = vmatpush.msra.mxu0 %v428
        %446 = vmatmul.f32.gmra.mxu0 %v425
        %v447 = vpop.f32.mrf.mxu0
        %v448 = vadd.f32 0.0, %v447
        %449 = vdwg.mxu0
        %v450 = vadd.f32 %v389, %v420
        %452 = vrot.lane.b32.xlu0 %v448, 64
        %v453 = vpop.permute.xlu0 %452
        %v455 = vadd.f32 %v389, %v453
        %457 = vrot.lane.b32.xlu0 %v450, 120
        %v458 = vpop.permute.xlu0 %457
        %460 = vrot.lane.b32.xlu0 %v450, 112
        %v461 = vpop.permute.xlu0 %460
        %463 = vrot.lane.b32.xlu0 %v450, 104
        %v464 = vpop.permute.xlu0 %463
        %v466 = vrot.slane %v461, 4
        %vm467 = vcmask 1047556
        %v468 = vsel %vm467, %v466, %v450
        %v469 = vrot.slane %v450, 4
        %v470 = vsel %vm467, %v461, %v469
        %v472 = vunpack.c.l.s4 1983009808
        %v473 = vunpack.c.0.s8 %v472
        %v474 = vperm.slane %v468, %v473
        %v476 = vunpack.c.l.s4 1983009808
        %v477 = vunpack.c.0.s8 %v476
        %v478 = vperm.slane %v470, %v477
        %v479 = vrot.slane %v464, 4
        %v480 = vsel %vm467, %v479, %v458
        %v481 = vrot.slane %v458, 4
        %v482 = vsel %vm467, %v464, %v481
        %v484 = vunpack.c.l.s4 1983009808
        %v485 = vunpack.c.0.s8 %v484
        %v486 = vperm.slane %v480, %v485
        %v488 = vunpack.c.l.s4 1983009808
        %v489 = vunpack.c.0.s8 %v488
        %v490 = vperm.slane %v482, %v489
        %v491 = vrot.slane %v486, 4
        %v492 = vsel %vm467, %v491, %v474
        %v493 = vrot.slane %v474, 4
        %v494 = vsel %vm467, %v486, %v493
        %v496 = vunpack.c.l.s4 1934713408
        %v497 = vunpack.c.0.s8 %v496
        %v498 = vperm.slane %v492, %v497
        %v500 = vunpack.c.l.s4 1934713408
        %v501 = vunpack.c.0.s8 %v500
        %v502 = vperm.slane %v494, %v501
        %v503 = vrot.slane %v490, 4
        %v504 = vsel %vm467, %v503, %v478
        %v505 = vrot.slane %v478, 4
        %v506 = vsel %vm467, %v490, %v505
        %v508 = vunpack.c.l.s4 1934713408
        %v509 = vunpack.c.0.s8 %v508
        %v510 = vperm.slane %v504, %v509
        %v512 = vunpack.c.l.s4 1934713408
        %v513 = vunpack.c.0.s8 %v512
        %v514 = vperm.slane %v506, %v513
        %v515 = vrot.slane %v498, 4
        %v516 = vsel %vm467, 0.0, %v515
        %v517 = vrot.slane %v502, 4
        %v518 = vsel %vm467, 0.0, %v517
        %v519 = vrot.slane %v510, 4
        %v520 = vsel %vm467, 0.0, %v519
        %v521 = vrot.slane %v514, 4
        %v522 = vsel %vm467, 0.0, %v521
        %v523 = vsel %vm467, %v517, %v498
        %v525 = vunpack.c.l.s4 1983009808
        %v526 = vunpack.c.0.s8 %v525
        %v527 = vperm.slane %v523, %v526
        %v528 = vrot.slane %v518, 4
        %v529 = vsel %vm467, %v528, %v516
        %v531 = vunpack.c.l.s4 1983009808
        %v532 = vunpack.c.0.s8 %v531
        %v533 = vperm.slane %v529, %v532
        %v534 = vsel %vm467, %v521, %v510
        %v536 = vunpack.c.l.s4 1983009808
        %v537 = vunpack.c.0.s8 %v536
        %v538 = vperm.slane %v534, %v537
        %v539 = vrot.slane %v522, 4
        %v540 = vsel %vm467, %v539, %v520
        %v542 = vunpack.c.l.s4 1983009808
        %v543 = vunpack.c.0.s8 %v542
        %v544 = vperm.slane %v540, %v543
        %v545 = vrot.slane %v533, 4
        %v546 = vsel %vm467, %v545, %v527
        %v547 = vrot.slane %v527, 4
        %v548 = vsel %vm467, %v533, %v547
        %v550 = vunpack.c.l.s4 1934713408
        %v551 = vunpack.c.0.s8 %v550
        %v552 = vperm.slane %v546, %v551
        %v554 = vunpack.c.l.s4 1934713408
        %v555 = vunpack.c.0.s8 %v554
        %v556 = vperm.slane %v548, %v555
        %v557 = vrot.slane %v544, 4
        %v558 = vsel %vm467, %v557, %v538
        %v559 = vrot.slane %v538, 4
        %v560 = vsel %vm467, %v544, %v559
        %v562 = vunpack.c.l.s4 1934713408
        %v563 = vunpack.c.0.s8 %v562
        %v564 = vperm.slane %v558, %v563
        %v566 = vunpack.c.l.s4 1934713408
        %v567 = vunpack.c.0.s8 %v566
        %v568 = vperm.slane %v560, %v567
        %v569 = vrot.slane %v564, 4
        %v570 = vsel %vm467, %v569, %v552
        %v571 = vrot.slane %v552, 4
        %v572 = vsel %vm467, %v564, %v571
        %v573 = vrot.slane %v568, 4
        %v574 = vsel %vm467, %v573, %v556
        %v575 = vrot.slane %v556, 4
        %v576 = vsel %vm467, %v568, %v575
        %577 = vrot.lane.b32.xlu0 %v389, 120
        %v578 = vpop.permute.xlu0 %577
        %579 = vrot.lane.b32.xlu0 %v389, 112
        %v580 = vpop.permute.xlu0 %579
        %581 = vrot.lane.b32.xlu0 %v389, 104
        %v582 = vpop.permute.xlu0 %581
        %583 = vrot.lane.b32.xlu0 %v389, 96
        %v584 = vpop.permute.xlu0 %583
        %585 = vrot.lane.b32.xlu0 %v578, 96
        %v586 = vpop.permute.xlu0 %585
        %587 = vrot.lane.b32.xlu0 %v580, 96
        %v588 = vpop.permute.xlu0 %587
        %589 = vrot.lane.b32.xlu0 %v582, 96
        %v590 = vpop.permute.xlu0 %589
        %v595 = vrot.slane %v588, 4
        %v596 = vsel %vm467, %v595, %v584
        %v597 = vrot.slane %v584, 4
        %v598 = vsel %vm467, %v588, %v597
        %v600 = vunpack.c.l.s4 1983009808
        %v601 = vunpack.c.0.s8 %v600
        %v602 = vperm.slane %v596, %v601
        %v604 = vunpack.c.l.s4 1983009808
        %v605 = vunpack.c.0.s8 %v604
        %v606 = vperm.slane %v598, %v605
        %v607 = vrot.slane %v590, 4
        %v608 = vsel %vm467, %v607, %v586
        %v609 = vrot.slane %v586, 4
        %v610 = vsel %vm467, %v590, %v609
        %v612 = vunpack.c.l.s4 1983009808
        %v613 = vunpack.c.0.s8 %v612
        %v614 = vperm.slane %v608, %v613
        %v616 = vunpack.c.l.s4 1983009808
        %v617 = vunpack.c.0.s8 %v616
        %v618 = vperm.slane %v610, %v617
        %v619 = vrot.slane %v614, 4
        %v620 = vsel %vm467, %v619, %v602
        %v621 = vrot.slane %v602, 4
        %v622 = vsel %vm467, %v614, %v621
        %v624 = vunpack.c.l.s4 1934713408
        %v625 = vunpack.c.0.s8 %v624
        %v626 = vperm.slane %v620, %v625
        %v628 = vunpack.c.l.s4 1934713408
        %v629 = vunpack.c.0.s8 %v628
        %v630 = vperm.slane %v622, %v629
        %v631 = vrot.slane %v618, 4
        %v632 = vsel %vm467, %v631, %v606
        %v633 = vrot.slane %v606, 4
        %v634 = vsel %vm467, %v618, %v633
        %v636 = vunpack.c.l.s4 1934713408
        %v637 = vunpack.c.0.s8 %v636
        %v638 = vperm.slane %v632, %v637
        %v640 = vunpack.c.l.s4 1934713408
        %v641 = vunpack.c.0.s8 %v640
        %v642 = vperm.slane %v634, %v641
        %v643 = vrot.slane %v626, 4
        %v644 = vsel %vm467, 0.0, %v643
        %v645 = vrot.slane %v630, 4
        %v646 = vsel %vm467, 0.0, %v645
        %v647 = vrot.slane %v638, 4
        %v648 = vsel %vm467, 0.0, %v647
        %v649 = vrot.slane %v642, 4
        %v650 = vsel %vm467, 0.0, %v649
        %v651 = vsel %vm467, %v645, %v626
        %v653 = vunpack.c.l.s4 1983009808
        %v654 = vunpack.c.0.s8 %v653
        %v655 = vperm.slane %v651, %v654
        %v656 = vrot.slane %v646, 4
        %v657 = vsel %vm467, %v656, %v644
        %v659 = vunpack.c.l.s4 1983009808
        %v660 = vunpack.c.0.s8 %v659
        %v661 = vperm.slane %v657, %v660
        %v662 = vsel %vm467, %v649, %v638
        %v664 = vunpack.c.l.s4 1983009808
        %v665 = vunpack.c.0.s8 %v664
        %v666 = vperm.slane %v662, %v665
        %v667 = vrot.slane %v650, 4
        %v668 = vsel %vm467, %v667, %v648
        %v670 = vunpack.c.l.s4 1983009808
        %v671 = vunpack.c.0.s8 %v670
        %v672 = vperm.slane %v668, %v671
        %v673 = vrot.slane %v661, 4
        %v674 = vsel %vm467, %v673, %v655
        %v675 = vrot.slane %v655, 4
        %v676 = vsel %vm467, %v661, %v675
        %v678 = vunpack.c.l.s4 1934713408
        %v679 = vunpack.c.0.s8 %v678
        %v680 = vperm.slane %v674, %v679
        %v682 = vunpack.c.l.s4 1934713408
        %v683 = vunpack.c.0.s8 %v682
        %v684 = vperm.slane %v676, %v683
        %v685 = vrot.slane %v672, 4
        %v686 = vsel %vm467, %v685, %v666
        %v687 = vrot.slane %v666, 4
        %v688 = vsel %vm467, %v672, %v687
        %v690 = vunpack.c.l.s4 1934713408
        %v691 = vunpack.c.0.s8 %v690
        %v692 = vperm.slane %v686, %v691
        %v694 = vunpack.c.l.s4 1934713408
        %v695 = vunpack.c.0.s8 %v694
        %v696 = vperm.slane %v688, %v695
        %v697 = vrot.slane %v692, 4
        %v698 = vsel %vm467, %v697, %v680
        %v699 = vrot.slane %v680, 4
        %v700 = vsel %vm467, %v692, %v699
        %v701 = vrot.slane %v696, 4
        %v702 = vsel %vm467, %v701, %v684
        %v703 = vrot.slane %v684, 4
        %v704 = vsel %vm467, %v696, %v703
        %706 = vrot.lane.b32.xlu0 %v455, 120
        %v707 = vpop.permute.xlu0 %706
        %708 = vrot.lane.b32.xlu0 %v455, 112
        %v709 = vpop.permute.xlu0 %708
        %710 = vrot.lane.b32.xlu0 %v455, 104
        %v711 = vpop.permute.xlu0 %710
        %712 = vrot.lane.b32.xlu0 %v455, 64
        %v713 = vpop.permute.xlu0 %712
        %714 = vrot.lane.b32.xlu0 %v707, 64
        %v715 = vpop.permute.xlu0 %714
        %716 = vrot.lane.b32.xlu0 %v709, 64
        %v717 = vpop.permute.xlu0 %716
        %718 = vrot.lane.b32.xlu0 %v711, 64
        %v719 = vpop.permute.xlu0 %718
        %v724 = vrot.slane %v717, 4
        %v725 = vsel %vm467, %v724, %v713
        %v726 = vrot.slane %v713, 4
        %v727 = vsel %vm467, %v717, %v726
        %v729 = vunpack.c.l.s4 1983009808
        %v730 = vunpack.c.0.s8 %v729
        %v731 = vperm.slane %v725, %v730
        %v733 = vunpack.c.l.s4 1983009808
        %v734 = vunpack.c.0.s8 %v733
        %v735 = vperm.slane %v727, %v734
        %v736 = vrot.slane %v719, 4
        %v737 = vsel %vm467, %v736, %v715
        %v738 = vrot.slane %v715, 4
        %v739 = vsel %vm467, %v719, %v738
        %v741 = vunpack.c.l.s4 1983009808
        %v742 = vunpack.c.0.s8 %v741
        %v743 = vperm.slane %v737, %v742
        %v745 = vunpack.c.l.s4 1983009808
        %v746 = vunpack.c.0.s8 %v745
        %v747 = vperm.slane %v739, %v746
        %v748 = vrot.slane %v743, 4
        %v749 = vsel %vm467, %v748, %v731
        %v750 = vrot.slane %v731, 4
        %v751 = vsel %vm467, %v743, %v750
        %v753 = vunpack.c.l.s4 1934713408
        %v754 = vunpack.c.0.s8 %v753
        %v755 = vperm.slane %v749, %v754
        %v757 = vunpack.c.l.s4 1934713408
        %v758 = vunpack.c.0.s8 %v757
        %v759 = vperm.slane %v751, %v758
        %v760 = vrot.slane %v747, 4
        %v761 = vsel %vm467, %v760, %v735
        %v762 = vrot.slane %v735, 4
        %v763 = vsel %vm467, %v747, %v762
        %v765 = vunpack.c.l.s4 1934713408
        %v766 = vunpack.c.0.s8 %v765
        %v767 = vperm.slane %v761, %v766
        %v769 = vunpack.c.l.s4 1934713408
        %v770 = vunpack.c.0.s8 %v769
        %v771 = vperm.slane %v763, %v770
        %v772 = vrot.slane %v755, 4
        %v773 = vsel %vm467, 0.0, %v772
        %v774 = vrot.slane %v759, 4
        %v775 = vsel %vm467, 0.0, %v774
        %v776 = vrot.slane %v767, 4
        %v777 = vsel %vm467, 0.0, %v776
        %v778 = vrot.slane %v771, 4
        %v779 = vsel %vm467, 0.0, %v778
        %v780 = vsel %vm467, %v774, %v755
        %v782 = vunpack.c.l.s4 1983009808
        %v783 = vunpack.c.0.s8 %v782
        %v784 = vperm.slane %v780, %v783
        %v785 = vrot.slane %v775, 4
        %v786 = vsel %vm467, %v785, %v773
        %v788 = vunpack.c.l.s4 1983009808
        %v789 = vunpack.c.0.s8 %v788
        %v790 = vperm.slane %v786, %v789
        %v791 = vsel %vm467, %v778, %v767
        %v793 = vunpack.c.l.s4 1983009808
        %v794 = vunpack.c.0.s8 %v793
        %v795 = vperm.slane %v791, %v794
        %v796 = vrot.slane %v779, 4
        %v797 = vsel %vm467, %v796, %v777
        %v799 = vunpack.c.l.s4 1983009808
        %v800 = vunpack.c.0.s8 %v799
        %v801 = vperm.slane %v797, %v800
        %v802 = vrot.slane %v790, 4
        %v803 = vsel %vm467, %v802, %v784
        %v804 = vrot.slane %v784, 4
        %v805 = vsel %vm467, %v790, %v804
        %v807 = vunpack.c.l.s4 1934713408
        %v808 = vunpack.c.0.s8 %v807
        %v809 = vperm.slane %v803, %v808
        %v811 = vunpack.c.l.s4 1934713408
        %v812 = vunpack.c.0.s8 %v811
        %v813 = vperm.slane %v805, %v812
        %v814 = vrot.slane %v801, 4
        %v815 = vsel %vm467, %v814, %v795
        %v816 = vrot.slane %v795, 4
        %v817 = vsel %vm467, %v801, %v816
        %v819 = vunpack.c.l.s4 1934713408
        %v820 = vunpack.c.0.s8 %v819
        %v821 = vperm.slane %v815, %v820
        %v823 = vunpack.c.l.s4 1934713408
        %v824 = vunpack.c.0.s8 %v823
        %v825 = vperm.slane %v817, %v824
        %v826 = vrot.slane %v821, 4
        %v827 = vsel %vm467, %v826, %v809
        %v828 = vrot.slane %v809, 4
        %v829 = vsel %vm467, %v821, %v828
        %v830 = vrot.slane %v825, 4
        %v831 = vsel %vm467, %v830, %v813
        %v832 = vrot.slane %v813, 4
        %v833 = vsel %vm467, %v825, %v832
        %vm834 = vcmask 64512
        %v836 = vsel %vm834, %v570, 0
        %v839 = vsel %vm834, %v698, 0
        %841 = vmatpush.xpose.msra.mxu0 0.0
        %842 = vmatpush.xpose.msra.mxu0 0.0
        %843 = vmatpush.xpose.msra.mxu0 0.0
        %844 = vmatpush.xpose.msra.mxu0 0.0
        %845 = vmatpush.xpose.msra.mxu0 0.0
        %846 = vmatpush.xpose.msra.mxu0 0.0
        %847 = vmatpush.xpose.msra.mxu0 0.0
        %848 = vmatpush.xpose.msra.mxu0 0.0
        %849 = vmatpush.xpose.msra.mxu0 0.0
        %850 = vmatpush.xpose.msra.mxu0 0.0
        %851 = vmatpush.xpose.msra.mxu0 0.0
        %852 = vmatpush.xpose.msra.mxu0 0.0
        %853 = vmatpush.xpose.msra.mxu0 0.0
        %854 = vmatpush.xpose.msra.mxu0 0.0
        %855 = vmatpush.xpose.msra.mxu0 0.0
        %856 = vmatpush.xpose.msra.mxu0 %v839
        %857 = vmatmul.f32.gmra.mxu0 %v836
        %v858 = vpop.f32.mrf.mxu0
        %v859 = vadd.f32 0.0, %v858
        %860 = vdwg.mxu0
        %v862 = vsel %vm834, %v572, 0
        %v865 = vsel %vm834, %v700, 0
        %867 = vmatpush.xpose.msra.mxu0 0.0
        %868 = vmatpush.xpose.msra.mxu0 0.0
        %869 = vmatpush.xpose.msra.mxu0 0.0
        %870 = vmatpush.xpose.msra.mxu0 0.0
        %871 = vmatpush.xpose.msra.mxu0 0.0
        %872 = vmatpush.xpose.msra.mxu0 0.0
        %873 = vmatpush.xpose.msra.mxu0 0.0
        %874 = vmatpush.xpose.msra.mxu0 0.0
        %875 = vmatpush.xpose.msra.mxu0 0.0
        %876 = vmatpush.xpose.msra.mxu0 0.0
        %877 = vmatpush.xpose.msra.mxu0 0.0
        %878 = vmatpush.xpose.msra.mxu0 0.0
        %879 = vmatpush.xpose.msra.mxu0 0.0
        %880 = vmatpush.xpose.msra.mxu0 0.0
        %881 = vmatpush.xpose.msra.mxu0 0.0
        %882 = vmatpush.xpose.msra.mxu0 %v865
        %883 = vmatmul.f32.gmra.mxu0 %v862
        %v884 = vpop.f32.mrf.mxu0
        %v885 = vadd.f32 0.0, %v884
        %886 = vdwg.mxu0
        %v888 = vsel %vm834, %v574, 0
        %v891 = vsel %vm834, %v702, 0
        %893 = vmatpush.xpose.msra.mxu0 0.0
        %894 = vmatpush.xpose.msra.mxu0 0.0
        %895 = vmatpush.xpose.msra.mxu0 0.0
        %896 = vmatpush.xpose.msra.mxu0 0.0
        %897 = vmatpush.xpose.msra.mxu0 0.0
        %898 = vmatpush.xpose.msra.mxu0 0.0
        %899 = vmatpush.xpose.msra.mxu0 0.0
        %900 = vmatpush.xpose.msra.mxu0 0.0
        %901 = vmatpush.xpose.msra.mxu0 0.0
        %902 = vmatpush.xpose.msra.mxu0 0.0
        %903 = vmatpush.xpose.msra.mxu0 0.0
        %904 = vmatpush.xpose.msra.mxu0 0.0
        %905 = vmatpush.xpose.msra.mxu0 0.0
        %906 = vmatpush.xpose.msra.mxu0 0.0
        %907 = vmatpush.xpose.msra.mxu0 0.0
        %908 = vmatpush.xpose.msra.mxu0 %v891
        %909 = vmatmul.f32.gmra.mxu0 %v888
        %v910 = vpop.f32.mrf.mxu0
        %v911 = vadd.f32 0.0, %v910
        %912 = vdwg.mxu0
        %v914 = vsel %vm834, %v576, 0
        %v917 = vsel %vm834, %v704, 0
        %919 = vmatpush.xpose.msra.mxu0 0.0
        %920 = vmatpush.xpose.msra.mxu0 0.0
        %921 = vmatpush.xpose.msra.mxu0 0.0
        %922 = vmatpush.xpose.msra.mxu0 0.0
        %923 = vmatpush.xpose.msra.mxu0 0.0
        %924 = vmatpush.xpose.msra.mxu0 0.0
        %925 = vmatpush.xpose.msra.mxu0 0.0
        %926 = vmatpush.xpose.msra.mxu0 0.0
        %927 = vmatpush.xpose.msra.mxu0 0.0
        %928 = vmatpush.xpose.msra.mxu0 0.0
        %929 = vmatpush.xpose.msra.mxu0 0.0
        %930 = vmatpush.xpose.msra.mxu0 0.0
        %931 = vmatpush.xpose.msra.mxu0 0.0
        %932 = vmatpush.xpose.msra.mxu0 0.0
        %933 = vmatpush.xpose.msra.mxu0 0.0
        %934 = vmatpush.xpose.msra.mxu0 %v917
        %935 = vmatmul.f32.gmra.mxu0 %v914
        %v936 = vpop.f32.mrf.mxu0
        %v937 = vadd.f32 0.0, %v936
        %938 = vdwg.mxu0
        %v939 = vsel %vm834, %v859, -inf
        %940 = vmax.xlane.f32.xlu0 %v939
        %v941 = vpop.xlane.xlu0 %940
        %v942 = vsel %vm834, %v885, -inf
        %943 = vmax.xlane.f32.xlu0 %v942
        %v944 = vpop.xlane.xlu0 %943
        %v945 = vsel %vm834, %v911, -inf
        %946 = vmax.xlane.f32.xlu0 %v945
        %v947 = vpop.xlane.xlu0 %946
        %v948 = vsel %vm834, %v937, -inf
        %949 = vmax.xlane.f32.xlu0 %v948
        %v950 = vpop.xlane.xlu0 %949
        %v951 = vsub.f32 %v859, %v941
        %v952 = vsub.f32 %v885, %v944
        %v953 = vsub.f32 %v911, %v947
        %v954 = vsub.f32 %v937, %v950
        %v955 = vmul.f32 %v951, 1.442695
        %v956 = vpow.pop %v955
        %v957 = vmul.f32 %v952, 1.442695
        %v958 = vpow.pop %v957
        %v959 = vmul.f32 %v953, 1.442695
        %v960 = vpow.pop %v959
        %v961 = vmul.f32 %v954, 1.442695
        %v962 = vpow.pop %v961
        %v963 = vsel %vm834, %v956, 0.0
        %964 = vadd.xlane.f32.xlu0 %v963
        %v965 = vpop.xlane.xlu0 %964
        %v966 = vsel %vm834, %v958, 0.0
        %967 = vadd.xlane.f32.xlu0 %v966
        %v968 = vpop.xlane.xlu0 %967
        %v969 = vsel %vm834, %v960, 0.0
        %970 = vadd.xlane.f32.xlu0 %v969
        %v971 = vpop.xlane.xlu0 %970
        %v972 = vsel %vm834, %v962, 0.0
        %973 = vadd.xlane.f32.xlu0 %v972
        %v974 = vpop.xlane.xlu0 %973
        %v976 = vsel %vm834, %v956, 0
        %978 = vmatpush.msra.mxu0 0.0
        %979 = vmatpush.msra.mxu0 0.0
        %980 = vmatpush.msra.mxu0 0.0
        %981 = vmatpush.msra.mxu0 0.0
        %982 = vmatpush.msra.mxu0 0.0
        %983 = vmatpush.msra.mxu0 0.0
        %984 = vmatpush.msra.mxu0 0.0
        %985 = vmatpush.msra.mxu0 0.0
        %986 = vmatpush.msra.mxu0 0.0
        %987 = vmatpush.msra.mxu0 0.0
        %988 = vmatpush.msra.mxu0 0.0
        %989 = vmatpush.msra.mxu0 0.0
        %990 = vmatpush.msra.mxu0 0.0
        %991 = vmatpush.msra.mxu0 0.0
        %992 = vmatpush.msra.mxu0 0.0
        %993 = vmatpush.msra.mxu0 %v827
        %994 = vmatmul.f32.gmra.mxu0 %v976
        %v995 = vpop.f32.mrf.mxu0
        %v996 = vadd.f32 0.0, %v995
        %997 = vdwg.mxu0
        %v999 = vsel %vm834, %v958, 0
        %1001 = vmatpush.msra.mxu0 0.0
        %1002 = vmatpush.msra.mxu0 0.0
        %1003 = vmatpush.msra.mxu0 0.0
        %1004 = vmatpush.msra.mxu0 0.0
        %1005 = vmatpush.msra.mxu0 0.0
        %1006 = vmatpush.msra.mxu0 0.0
        %1007 = vmatpush.msra.mxu0 0.0
        %1008 = vmatpush.msra.mxu0 0.0
        %1009 = vmatpush.msra.mxu0 0.0
        %1010 = vmatpush.msra.mxu0 0.0
        %1011 = vmatpush.msra.mxu0 0.0
        %1012 = vmatpush.msra.mxu0 0.0
        %1013 = vmatpush.msra.mxu0 0.0
        %1014 = vmatpush.msra.mxu0 0.0
        %1015 = vmatpush.msra.mxu0 0.0
        %1016 = vmatpush.msra.mxu0 %v829
        %1017 = vmatmul.f32.gmra.mxu0 %v999
        %v1018 = vpop.f32.mrf.mxu0
        %v1019 = vadd.f32 0.0, %v1018
        %1020 = vdwg.mxu0
        %v1022 = vsel %vm834, %v960, 0
        %1024 = vmatpush.msra.mxu0 0.0
        %1025 = vmatpush.msra.mxu0 0.0
        %1026 = vmatpush.msra.mxu0 0.0
        %1027 = vmatpush.msra.mxu0 0.0
        %1028 = vmatpush.msra.mxu0 0.0
        %1029 = vmatpush.msra.mxu0 0.0
        %1030 = vmatpush.msra.mxu0 0.0
        %1031 = vmatpush.msra.mxu0 0.0
        %1032 = vmatpush.msra.mxu0 0.0
        %1033 = vmatpush.msra.mxu0 0.0
        %1034 = vmatpush.msra.mxu0 0.0
        %1035 = vmatpush.msra.mxu0 0.0
        %1036 = vmatpush.msra.mxu0 0.0
        %1037 = vmatpush.msra.mxu0 0.0
        %1038 = vmatpush.msra.mxu0 0.0
        %1039 = vmatpush.msra.mxu0 %v831
        %1040 = vmatmul.f32.gmra.mxu0 %v1022
        %v1041 = vpop.f32.mrf.mxu0
        %v1042 = vadd.f32 0.0, %v1041
        %1043 = vdwg.mxu0
        %v1045 = vsel %vm834, %v962, 0
        %1047 = vmatpush.msra.mxu0 0.0
        %1048 = vmatpush.msra.mxu0 0.0
        %1049 = vmatpush.msra.mxu0 0.0
        %1050 = vmatpush.msra.mxu0 0.0
        %1051 = vmatpush.msra.mxu0 0.0
        %1052 = vmatpush.msra.mxu0 0.0
        %1053 = vmatpush.msra.mxu0 0.0
        %1054 = vmatpush.msra.mxu0 0.0
        %1055 = vmatpush.msra.mxu0 0.0
        %1056 = vmatpush.msra.mxu0 0.0
        %1057 = vmatpush.msra.mxu0 0.0
        %1058 = vmatpush.msra.mxu0 0.0
        %1059 = vmatpush.msra.mxu0 0.0
        %1060 = vmatpush.msra.mxu0 0.0
        %1061 = vmatpush.msra.mxu0 0.0
        %1062 = vmatpush.msra.mxu0 %v833
        %1063 = vmatmul.f32.gmra.mxu0 %v1045
        %v1064 = vpop.f32.mrf.mxu0
        %v1065 = vadd.f32 0.0, %v1064
        %1066 = vdwg.mxu0
        %v1067 = vrcp.pop %v965
        %v1068 = vrcp.pop %v968
        %v1069 = vrcp.pop %v971
        %v1070 = vrcp.pop %v974
        %v1071 = vmul.f32 %v996, %v1067
        %v1072 = vmul.f32 %v1019, %v1068
        %v1073 = vmul.f32 %v1042, %v1069
        %v1074 = vmul.f32 %v1065, %v1070
        %v1075 = vrot.slane %v1073, 4
        %v1076 = vsel %vm467, %v1075, %v1071
        %v1077 = vrot.slane %v1071, 4
        %v1078 = vsel %vm467, %v1073, %v1077
        %v1080 = vunpack.c.l.s4 1983009808
        %v1081 = vunpack.c.0.s8 %v1080
        %v1082 = vperm.slane %v1076, %v1081
        %v1084 = vunpack.c.l.s4 1983009808
        %v1085 = vunpack.c.0.s8 %v1084
        %v1086 = vperm.slane %v1078, %v1085
        %v1087 = vrot.slane %v1074, 4
        %v1088 = vsel %vm467, %v1087, %v1072
        %v1089 = vrot.slane %v1072, 4
        %v1090 = vsel %vm467, %v1074, %v1089
        %v1092 = vunpack.c.l.s4 1983009808
        %v1093 = vunpack.c.0.s8 %v1092
        %v1094 = vperm.slane %v1088, %v1093
        %v1096 = vunpack.c.l.s4 1983009808
        %v1097 = vunpack.c.0.s8 %v1096
        %v1098 = vperm.slane %v1090, %v1097
        %v1099 = vrot.slane %v1094, 4
        %v1100 = vsel %vm467, %v1099, %v1082
        %v1101 = vrot.slane %v1082, 4
        %v1102 = vsel %vm467, %v1094, %v1101
        %v1104 = vunpack.c.l.s4 1934713408
        %v1105 = vunpack.c.0.s8 %v1104
        %v1106 = vperm.slane %v1100, %v1105
        %v1108 = vunpack.c.l.s4 1934713408
        %v1109 = vunpack.c.0.s8 %v1108
        %v1110 = vperm.slane %v1102, %v1109
        %v1111 = vrot.slane %v1098, 4
        %v1112 = vsel %vm467, %v1111, %v1086
        %v1113 = vrot.slane %v1086, 4
        %v1114 = vsel %vm467, %v1098, %v1113
        %v1116 = vunpack.c.l.s4 1934713408
        %v1117 = vunpack.c.0.s8 %v1116
        %v1118 = vperm.slane %v1112, %v1117
        %v1120 = vunpack.c.l.s4 1934713408
        %v1121 = vunpack.c.0.s8 %v1120
        %v1122 = vperm.slane %v1114, %v1121
        %v1123 = vrot.slane %v1106, 4
        %v1124 = vsel %vm467, 0.0, %v1123
        %v1125 = vrot.slane %v1110, 4
        %v1126 = vsel %vm467, 0.0, %v1125
        %v1127 = vrot.slane %v1118, 4
        %v1128 = vsel %vm467, 0.0, %v1127
        %v1129 = vrot.slane %v1122, 4
        %v1130 = vsel %vm467, 0.0, %v1129
        %v1131 = vsel %vm467, %v1125, %v1106
        %v1133 = vunpack.c.l.s4 1983009808
        %v1134 = vunpack.c.0.s8 %v1133
        %v1135 = vperm.slane %v1131, %v1134
        %v1136 = vrot.slane %v1126, 4
        %v1137 = vsel %vm467, %v1136, %v1124
        %v1139 = vunpack.c.l.s4 1983009808
        %v1140 = vunpack.c.0.s8 %v1139
        %v1141 = vperm.slane %v1137, %v1140
        %v1142 = vsel %vm467, %v1129, %v1118
        %v1144 = vunpack.c.l.s4 1983009808
        %v1145 = vunpack.c.0.s8 %v1144
        %v1146 = vperm.slane %v1142, %v1145
        %v1147 = vrot.slane %v1130, 4
        %v1148 = vsel %vm467, %v1147, %v1128
        %v1150 = vunpack.c.l.s4 1983009808
        %v1151 = vunpack.c.0.s8 %v1150
        %v1152 = vperm.slane %v1148, %v1151
        %v1153 = vrot.slane %v1141, 4
        %v1154 = vsel %vm467, %v1153, %v1135
        %v1155 = vrot.slane %v1135, 4
        %v1156 = vsel %vm467, %v1141, %v1155
        %v1158 = vunpack.c.l.s4 1934713408
        %v1159 = vunpack.c.0.s8 %v1158
        %v1160 = vperm.slane %v1154, %v1159
        %v1162 = vunpack.c.l.s4 1934713408
        %v1163 = vunpack.c.0.s8 %v1162
        %v1164 = vperm.slane %v1156, %v1163
        %v1165 = vrot.slane %v1152, 4
        %v1166 = vsel %vm467, %v1165, %v1146
        %v1167 = vrot.slane %v1146, 4
        %v1168 = vsel %vm467, %v1152, %v1167
        %v1170 = vunpack.c.l.s4 1934713408
        %v1171 = vunpack.c.0.s8 %v1170
        %v1172 = vperm.slane %v1166, %v1171
        %v1174 = vunpack.c.l.s4 1934713408
        %v1175 = vunpack.c.0.s8 %v1174
        %v1176 = vperm.slane %v1168, %v1175
        %v1177 = vrot.slane %v1172, 4
        %v1178 = vsel %vm467, %v1177, %v1160
        %v1179 = vrot.slane %v1160, 4
        %v1180 = vsel %vm467, %v1172, %v1179
        %v1181 = vrot.slane %v1176, 4
        %v1182 = vsel %vm467, %v1181, %v1164
        %v1183 = vrot.slane %v1164, 4
        %v1184 = vsel %vm467, %v1176, %v1183
        %1186 = vrot.lane.b32.xlu0 %v1180, 8
        %v1187 = vpop.permute.xlu0 %1186
        %1190 = vrot.lane.b32.xlu0 %v1182, 16
        %v1191 = vpop.permute.xlu0 %1190
        %1194 = vrot.lane.b32.xlu0 %v1184, 24
        %v1195 = vpop.permute.xlu0 %1194
        %v1197 = vsel %vm834, %v1178, %v1187
        %vm1198 = vcmask 130048
        %v1199 = vsel %vm1198, %v1197, %v1191
        %vm1200 = vcmask 195584
        %v1201 = vsel %vm1200, %v1199, %v1195
        %v1202 = vld [vmem:[#allocation10] sm:$0xff]
        %v1203 = vld [vmem:[#allocation10 + $0x8] sm:$0xff]
        %v1204 = vld [vmem:[#allocation10 + $0x10] sm:$0xff]
        %v1205 = vld [vmem:[#allocation10 + $0x18] sm:$0xff]
        %v1206 = vld [vmem:[%s6] sm:$0x1]
        %v1208 = vperm.slane %v1206, 0
        %v1211 = vsel %vm367, %v1201, 0
        %1213 = vmatpush.msra.mxu0 0.0
        %1214 = vmatpush.msra.mxu0 0.0
        %1215 = vmatpush.msra.mxu0 0.0
        %1216 = vmatpush.msra.mxu0 0.0
        %1217 = vmatpush.msra.mxu0 0.0
        %1218 = vmatpush.msra.mxu0 0.0
        %1219 = vmatpush.msra.mxu0 0.0
        %1220 = vmatpush.msra.mxu0 0.0
        %1221 = vmatpush.msra.mxu0 0.0
        %1222 = vmatpush.msra.mxu0 0.0
        %1223 = vmatpush.msra.mxu0 0.0
        %1224 = vmatpush.msra.mxu0 0.0
        %1225 = vmatpush.msra.mxu0 %v1205
        %1226 = vmatpush.msra.mxu0 %v1204
        %1227 = vmatpush.msra.mxu0 %v1203
        %1228 = vmatpush.msra.mxu0 %v1202
        %1229 = vmatmul.f32.gmra.mxu0 %v1211
        %v1230 = vpop.f32.mrf.mxu0
        %v1231 = vadd.f32 %v1208, %v1230
        %1232 = vdwg.mxu0
        %1233 = vst.msk [vmem:[%s357] sm:$0xff] %vm367, %v1231
        %s1234 = sand.u32 %s186, 1
        %s1235 = scalar_lea.sflag [#allocation4], %s1234
        %s1236 = sand.u32 %s186, 1
        %s1237 = smul.addr %s1236, 8
        %s1238 = scalar_lea.vmem [#allocation11], %s1237
        // Predicated region
        $region69: #{tpu_custom_call.1} parent=47 // pred_check
          %p1239 = pneg %p196
        $region70: #{tpu_custom_call.1} parent=47 // pred_check_branch
          %1241 = sbr.rel (%p1239) target = $region72
        $region71: #{tpu_custom_call.1} parent=47 // pred_region
          %1243 = vsyncadd %s1235, 0
          %s1244 = smul.addr %s26, 8
          %s1245 = scalar_lea.hbm %s7, %s1244
          %s1247 = sshll.u32 %s1238, 4
          %s1248 = int_to_ptr.vmem [resolvable:$true] %s1247
          %s1249 = sshll.u32 %s1245, 4
          %s1250 = int_to_ptr.hbm [resolvable:$true] %s1249
          %1252 = dma.vmem_to_hbm [thread:$0]  %s1248, 128, %s1250, %s1235
        $region72: #{tpu_custom_call.1} parent=47 // pred_fallthru
          _
      $region48: #{tpu_custom_call.1} parent=5 // pred_fallthru
        _
      %p1253 = scmp.le.s32.totalorder 2, %s21
      // Predicated region
      $region73: #{tpu_custom_call.1} parent=5 // pred_check
        %p1254 = pneg %p1253
      $region74: #{tpu_custom_call.1} parent=5 // pred_check_branch
        %1256 = sbr.rel (%p1254) target = $region76
      $region75: #{tpu_custom_call.1} parent=5 // pred_region
        %s1257 = ssub.s32 %s21, 2
        // Predicated region
        $region77: #{tpu_custom_call.1} parent=75 // pred_check
          %p1258 = pneg %p202
        $region78: #{tpu_custom_call.1} parent=75 // pred_check_branch
          %1260 = sbr.rel (%p1258) target = $region80
        $region79: #{tpu_custom_call.1} parent=75 // pred_region
          %s1261 = sand.u32 %s187, 1
          %s1262 = scalar_lea.sflag [#allocation4], %s1261
          %s1263 = sand.u32 %s187, 1
          %s1264 = smul.addr %s1263, 8
          %s1265 = scalar_lea.vmem [#allocation11], %s1264
          %1267 = dma.done %s1262, 128
        $region80: #{tpu_custom_call.1} parent=75 // pred_fallthru
          _
      $region76: #{tpu_custom_call.1} parent=5 // pred_fallthru
        _
    $region6: #{tpu_custom_call.1} parent=1 // loop_footer
      %s25 = sadd.s32 1, %s21
    $region7: #{tpu_custom_call.1} parent=1 // loop_footer_branch
      %20 = sbr.rel target = $region3
    $region8: #{tpu_custom_call.1} parent=1 // loop_exit
      _
    %1268 = vsyncpa [#allocation3], 1
    %s1269 = scalar_lea.sflag [#allocation3], 1
    %1270 = vsyncpa %s1269, 1
    %1271 = vsyncpa [#allocation6], 1
    %1272 = vsyncpa [#allocation9], 1
    %1273 = vsyncpa [#allocation4], 1
    %s1274 = scalar_lea.sflag [#allocation4], 1
    %1275 = vsyncpa %s1274, 1

// kernel: tpu_custom_call.1
$region0: #{tpu_custom_call.1}
  #allocation0 [shape = 'u32[]', space=smem, size = 0x4, offset = 0x4, fixed_abs, tag = 'smem constant byte address 0x4 - core index']
  #allocation1 [shape = 'u32[72,128]{1,0:T(1,128)}', space=vmem, size = 0x9000, scoped, tag = 'internal scratch']
  %s0 = inlined_call_operand.hbm [shape: f32[2,8,32], index: 0, kind: input, shape index: {}]
  %s1 = inlined_call_operand.hbm [shape: f32[32,128], index: 1, kind: input, shape index: {}]
  %s2 = inlined_call_operand.vmem [shape: f32[1,128], index: 2, kind: input, shape index: {}]
  %s3 = inlined_call_operand.hbm [shape: f32[4,32], index: 3, kind: input, shape index: {}]
  %s4 = inlined_call_operand.hbm [shape: f32[4,32], index: 4, kind: input, shape index: {}]
  %s5 = inlined_call_operand.hbm [shape: f32[32,32], index: 5, kind: input, shape index: {}]
  %s6 = inlined_call_operand.vmem [shape: f32[1,32], index: 6, kind: input, shape index: {}]
  %s7 = inlined_call_operand.hbm [shape: f32[2,8,32], index: 7, kind: output, shape index: {}]
  %s8 = sld [smem:[#allocation0]]
  $region81: #{tpu_custom_call.1} parent=0
    _
  %s10 = ssub.s32 1, %s8
  %s11 = scalar_select 0, %s10, %s8
  $region1: #{tpu_custom_call.1} parent=0
    #allocation2 [shape = 'u8[8192]{0}', space=vmem, size = 0x2000, scoped, tag = 'input window, operand 0']
    #allocation3 [shape = 's32[2]{0}', space=sflag, size = 0x8, scoped, tag = 'scoped memory for tpu_custom_call.1']
    #allocation4 [shape = 's32[2]{0}', space=sflag, size = 0x8, scoped, tag = 'scoped memory for tpu_custom_call.1']
    #allocation5 [shape = 'u8[16384]{0}', space=vmem, size = 0x4000, scoped, tag = 'input window, operand 1, single buffered']
    #allocation6 [shape = 's32[1]{0}', space=sflag, size = 0x4, scoped, tag = 'scoped memory for tpu_custom_call.1']
    #allocation7 [shape = 'u8[2048]{0}', space=vmem, size = 0x800, scoped, tag = 'input window, operand 3, single buffered']
    #allocation8 [shape = 'u8[2048]{0}', space=vmem, size = 0x800, scoped, tag = 'input window, operand 4, single buffered']
    #allocation9 [shape = 's32[1]{0}', space=sflag, size = 0x4, scoped, tag = 'scoped memory for tpu_custom_call.1']
    #allocation10 [shape = 'u8[16384]{0}', space=vmem, size = 0x4000, scoped, tag = 'input window, operand 5, single buffered']
    #allocation11 [shape = 'u8[8192]{0}', space=vmem, size = 0x2000, scoped, tag = 'output window, operand 0']
    %12 = vsyncpa [#allocation3], 0
    %s13 = scalar_lea.sflag [#allocation3], 1
    %14 = vsyncpa %s13, 0
    %15 = vsyncpa [#allocation6], 0
    %16 = vsyncpa [#allocation9], 0
    %17 = vsyncpa [#allocation4], 0
    %s18 = scalar_lea.sflag [#allocation4], 1
    %19 = vsyncpa %s18, 0
    loop: start=0, step=1, limit=4
    $region2: #{tpu_custom_call.1} parent=1 // loop_pre_header
      _
    $region3: #{tpu_custom_call.1} parent=1 // loop_header
      %s21 = sphi 0, %s25
      %p22 = scmp.ge.s32.totalorder %s21, 4
      %s31 = sphi 0, %s33
      %s34 = sphi 0, %s31
      %s35 = sphi 0, %s34
      %s51 = sphi 0, %s35
      %s55 = sphi 0, %s55
      %s57 = sphi 0, %s55
      %s58 = sphi 0, %s57
      %s72 = sphi 0, %s58
      %s76 = sphi 0, %s76
      %s78 = sphi 0, %s76
      %s79 = sphi 0, %s78
      %s93 = sphi 0, %s79
      %s97 = sphi 0, %s97
      %s99 = sphi 0, %s97
      %s100 = sphi 0, %s99
      %s114 = sphi 0, %s100
      %s118 = sphi 0, %s118
      %s120 = sphi 0, %s118
      %s121 = sphi 0, %s120
      %s135 = sphi 0, %s121
      %s139 = sphi 0, %s139
      %s141 = sphi 0, %s139
      %s142 = sphi 0, %s141
      %s156 = sphi 0, %s142
      %s160 = sphi 0, %s160
      %s162 = sphi 0, %s160
      %s163 = sphi 0, %s162
      %s177 = sphi 0, %s163
      %s183 = sphi 0, %s185
      %s186 = sphi 0, %s183
      %s187 = sphi 0, %s186
      %s203 = sphi 0, %s187
    $region4: #{tpu_custom_call.1} parent=1 // loop_header_branch
      %24 = sbr.rel (%p22) target = $region8
    $region5: #{tpu_custom_call.1} parent=1 // loop_body
      %s26 = ssub.s32 %s21, 1
      %s27 = ssub.s32 %s21, 2
      %s28 = sadd.s32 %s21, 1
      %s29 = ssub.s32 %s21, %s28
      %p30 = scmp.eq.s32.totalorder %s29, 0
      %s32 = sadd.s32 %s31, 1
      %s33 = scalar_select %p30, %s31, %s32
      %p36 = pneg %p30
      %p37 = scmp.eq.s32.totalorder %s21, 1
      %p38 = por %p36, %p37
      %p39 = scmp.ne.s32.totalorder %s31, %s34
      %p40 = scmp.eq.s32.totalorder %s21, 0
      %p41 = por %p39, %p40
      %p42 = scmp.ne.s32.totalorder %s31, %s34
      %p43 = scmp.eq.s32.totalorder %s26, 1
      %p44 = por %p42, %p43
      %p45 = scmp.ne.s32.totalorder %s34, %s35
      %p46 = scmp.eq.s32.totalorder %s26, 0
      %p47 = por %p45, %p46
      %p48 = scmp.ne.s32.totalorder %s34, %s35
      %p49 = scmp.eq.s32.totalorder %s27, 1
      %p50 = por %p48, %p49
      %p52 = scmp.ne.s32.totalorder %s35, %s51
      %p53 = scmp.eq.s32.totalorder %s27, 0
      %p54 = por %p52, %p53
      %s56 = sadd.s32 %s55, 1
      %p59 = scmp.eq.s32.totalorder %s21, 1
      %p60 = scmp.ne.s32.totalorder %s55, %s57
      %p61 = scmp.eq.s32.totalorder %s21, 0
      %p62 = por %p60, %p61
      %p63 = scmp.ne.s32.totalorder %s55, %s57
      %p64 = scmp.eq.s32.totalorder %s26, 1
      %p65 = por %p63, %p64
      %p66 = scmp.ne.s32.totalorder %s57, %s58
      %p67 = scmp.eq.s32.totalorder %s26, 0
      %p68 = por %p66, %p67
      %p69 = scmp.ne.s32.totalorder %s57, %s58
      %p70 = scmp.eq.s32.totalorder %s27, 1
      %p71 = por %p69, %p70
      %p73 = scmp.ne.s32.totalorder %s58, %s72
      %p74 = scmp.eq.s32.totalorder %s27, 0
      %p75 = por %p73, %p74
      %s77 = sadd.s32 %s76, 1
      %p80 = scmp.eq.s32.totalorder %s21, 1
      %p81 = scmp.ne.s32.totalorder %s76, %s78
      %p82 = scmp.eq.s32.totalorder %s21, 0
      %p83 = por %p81, %p82
      %p84 = scmp.ne.s32.totalorder %s76, %s78
      %p85 = scmp.eq.s32.totalorder %s26, 1
      %p86 = por %p84, %p85
      %p87 = scmp.ne.s32.totalorder %s78, %s79
      %p88 = scmp.eq.s32.totalorder %s26, 0
      %p89 = por %p87, %p88
      %p90 = scmp.ne.s32.totalorder %s78, %s79
      %p91 = scmp.eq.s32.totalorder %s27, 1
      %p92 = por %p90, %p91
      %p94 = scmp.ne.s32.totalorder %s79, %s93
      %p95 = scmp.eq.s32.totalorder %s27, 0
      %p96 = por %p94, %p95
      %s98 = sadd.s32 %s97, 1
      %p101 = scmp.eq.s32.totalorder %s21, 1
      %p102 = scmp.ne.s32.totalorder %s97, %s99
      %p103 = scmp.eq.s32.totalorder %s21, 0
      %p104 = por %p102, %p103
      %p105 = scmp.ne.s32.totalorder %s97, %s99
      %p106 = scmp.eq.s32.totalorder %s26, 1
      %p107 = por %p105, %p106
      %p108 = scmp.ne.s32.totalorder %s99, %s100
      %p109 = scmp.eq.s32.totalorder %s26, 0
      %p110 = por %p108, %p109
      %p111 = scmp.ne.s32.totalorder %s99, %s100
      %p112 = scmp.eq.s32.totalorder %s27, 1
      %p113 = por %p111, %p112
      %p115 = scmp.ne.s32.totalorder %s100, %s114
      %p116 = scmp.eq.s32.totalorder %s27, 0
      %p117 = por %p115, %p116
      %s119 = sadd.s32 %s118, 1
      %p122 = scmp.eq.s32.totalorder %s21, 1
      %p123 = scmp.ne.s32.totalorder %s118, %s120
      %p124 = scmp.eq.s32.totalorder %s21, 0
      %p125 = por %p123, %p124
      %p126 = scmp.ne.s32.totalorder %s118, %s120
      %p127 = scmp.eq.s32.totalorder %s26, 1
      %p128 = por %p126, %p127
      %p129 = scmp.ne.s32.totalorder %s120, %s121
      %p130 = scmp.eq.s32.totalorder %s26, 0
      %p131 = por %p129, %p130
      %p132 = scmp.ne.s32.totalorder %s120, %s121
      %p133 = scmp.eq.s32.totalorder %s27, 1
      %p134 = por %p132, %p133
      %p136 = scmp.ne.s32.totalorder %s121, %s135
      %p137 = scmp.eq.s32.totalorder %s27, 0
      %p138 = por %p136, %p137
      %s140 = sadd.s32 %s139, 1
      %p143 = scmp.eq.s32.totalorder %s21, 1
      %p144 = scmp.ne.s32.totalorder %s139, %s141
      %p145 = scmp.eq.s32.totalorder %s21, 0
      %p146 = por %p144, %p145
      %p147 = scmp.ne.s32.totalorder %s139, %s141
      %p148 = scmp.eq.s32.totalorder %s26, 1
      %p149 = por %p147, %p148
      %p150 = scmp.ne.s32.totalorder %s141, %s142
      %p151 = scmp.eq.s32.totalorder %s26, 0
      %p152 = por %p150, %p151
      %p153 = scmp.ne.s32.totalorder %s141, %s142
      %p154 = scmp.eq.s32.totalorder %s27, 1
      %p155 = por %p153, %p154
      %p157 = scmp.ne.s32.totalorder %s142, %s156
      %p158 = scmp.eq.s32.totalorder %s27, 0
      %p159 = por %p157, %p158
      %s161 = sadd.s32 %s160, 1
      %p164 = scmp.eq.s32.totalorder %s21, 1
      %p165 = scmp.ne.s32.totalorder %s160, %s162
      %p166 = scmp.eq.s32.totalorder %s21, 0
      %p167 = por %p165, %p166
      %p168 = scmp.ne.s32.totalorder %s160, %s162
      %p169 = scmp.eq.s32.totalorder %s26, 1
      %p170 = por %p168, %p169
      %p171 = scmp.ne.s32.totalorder %s162, %s163
      %p172 = scmp.eq.s32.totalorder %s26, 0
      %p173 = por %p171, %p172
      %p174 = scmp.ne.s32.totalorder %s162, %s163
      %p175 = scmp.eq.s32.totalorder %s27, 1
      %p176 = por %p174, %p175
      %p178 = scmp.ne.s32.totalorder %s163, %s177
      %p179 = scmp.eq.s32.totalorder %s27, 0
      %p180 = por %p178, %p179
      %s181 = ssub.s32 %s21, %s28
      %p182 = scmp.eq.s32.totalorder %s181, 0
      %s184 = sadd.s32 %s183, 1
      %s185 = scalar_select %p182, %s183, %s184
      %p188 = pneg %p182
      %p189 = scmp.eq.s32.totalorder %s21, 1
      %p190 = por %p188, %p189
      %p191 = scmp.ne.s32.totalorder %s183, %s186
      %p192 = scmp.eq.s32.totalorder %s21, 0
      %p193 = por %p191, %p192
      %p194 = scmp.ne.s32.totalorder %s183, %s186
      %p195 = scmp.eq.s32.totalorder %s26, 1
      %p196 = por %p194, %p195
      %p197 = scmp.ne.s32.totalorder %s186, %s187
      %p198 = scmp.eq.s32.totalorder %s26, 0
      %p199 = por %p197, %p198
      %p200 = scmp.ne.s32.totalorder %s186, %s187
      %p201 = scmp.eq.s32.totalorder %s27, 1
      %p202 = por %p200, %p201
      %p204 = scmp.ne.s32.totalorder %s187, %s203
      %p205 = scmp.eq.s32.totalorder %s27, 0
      %p206 = por %p204, %p205
      %p207 = scmp.le.s32.totalorder 1, %s21
      %p208 = scmp.lt.s32.totalorder %s21, 3
      %p209 = pnand %p207, %p208
      %p210 = pneg %p209
      // Predicated region
      $region9: #{tpu_custom_call.1} parent=5 // pred_check
        _
      $region10: #{tpu_custom_call.1} parent=5 // pred_check_branch
        %212 = sbr.rel (%p209) target = $region12
      $region11: #{tpu_custom_call.1} parent=5 // pred_region
        %s213 = ssub.s32 %s21, 1
        // Predicated region
        $region13: #{tpu_custom_call.1} parent=11 // pred_check
          %p214 = pneg %p68
        $region14: #{tpu_custom_call.1} parent=11 // pred_check_branch
          %216 = sbr.rel (%p214) target = $region16
        $region15: #{tpu_custom_call.1} parent=11 // pred_region
          %218 = vsyncadd [#allocation6], 0
          %s219 = sshll.u32 %s1, 4
          %s220 = int_to_ptr.hbm [resolvable:$true] %s219
          %s221 = sshll.u32 [#allocation5], 4
          %s222 = int_to_ptr.vmem [resolvable:$true] %s221
          %227 = dma.hbm_to_vmem [thread:$0]  %s220, 512, %s222, [#allocation6], 128, 128, 8
        $region16: #{tpu_custom_call.1} parent=11 // pred_fallthru
          _
        // Predicated region
        $region17: #{tpu_custom_call.1} parent=11 // pred_check
          %p228 = pneg %p89
        $region18: #{tpu_custom_call.1} parent=11 // pred_check_branch
          %230 = sbr.rel (%p228) target = $region20
        $region19: #{tpu_custom_call.1} parent=11 // pred_region
          _
        $region20: #{tpu_custom_call.1} parent=11 // pred_fallthru
          _
        // Predicated region
        $region21: #{tpu_custom_call.1} parent=11 // pred_check
          %p231 = pneg %p110
        $region22: #{tpu_custom_call.1} parent=11 // pred_check_branch
          %233 = sbr.rel (%p231) target = $region24
        $region23: #{tpu_custom_call.1} parent=11 // pred_region
          %235 = vsyncadd [#allocation6], 0
          %s237 = sshll.u32 %s3, 4
          %s238 = int_to_ptr.hbm [resolvable:$true] %s237
          %s239 = sshll.u32 [#allocation7], 4
          %s240 = int_to_ptr.vmem [resolvable:$true] %s239
          %242 = dma.hbm_to_vmem [thread:$0]  %s238, 64, %s240, [#allocation6]
        $region24: #{tpu_custom_call.1} parent=11 // pred_fallthru
          _
        // Predicated region
        $region25: #{tpu_custom_call.1} parent=11 // pred_check
          %p243 = pneg %p131
        $region26: #{tpu_custom_call.1} parent=11 // pred_check_branch
          %245 = sbr.rel (%p243) target = $region28
        $region27: #{tpu_custom_call.1} parent=11 // pred_region
          %247 = vsyncadd [#allocation9], 0
          %s249 = sshll.u32 %s4, 4
          %s250 = int_to_ptr.hbm [resolvable:$true] %s249
          %s251 = sshll.u32 [#allocation8], 4
          %s252 = int_to_ptr.vmem [resolvable:$true] %s251
          %254 = dma.hbm_to_vmem [thread:$0]  %s250, 64, %s252, [#allocation9]
        $region28: #{tpu_custom_call.1} parent=11 // pred_fallthru
          _
        // Predicated region
        $region29: #{tpu_custom_call.1} parent=11 // pred_check
          %p255 = pneg %p152
        $region30: #{tpu_custom_call.1} parent=11 // pred_check_branch
          %257 = sbr.rel (%p255) target = $region32
        $region31: #{tpu_custom_call.1} parent=11 // pred_region
          %259 = vsyncadd [#allocation9], 0
          %s260 = sshll.u32 %s5, 4
          %s261 = int_to_ptr.hbm [resolvable:$true] %s260
          %s262 = sshll.u32 [#allocation10], 4
          %s263 = int_to_ptr.vmem [resolvable:$true] %s262
          %268 = dma.hbm_to_vmem [thread:$0]  %s261, 512, %s263, [#allocation9], 128, 128, 8
        $region32: #{tpu_custom_call.1} parent=11 // pred_fallthru
          _
        // Predicated region
        $region33: #{tpu_custom_call.1} parent=11 // pred_check
          %p269 = pneg %p173
        $region34: #{tpu_custom_call.1} parent=11 // pred_check_branch
          %271 = sbr.rel (%p269) target = $region36
        $region35: #{tpu_custom_call.1} parent=11 // pred_region
          _
        $region36: #{tpu_custom_call.1} parent=11 // pred_fallthru
          _
      $region12: #{tpu_custom_call.1} parent=5 // pred_fallthru
        _
      %p272 = scmp.lt.s32.totalorder %s21, 2
      // Predicated region
      $region37: #{tpu_custom_call.1} parent=5 // pred_check
        %p273 = pneg %p272
      $region38: #{tpu_custom_call.1} parent=5 // pred_check_branch
        %275 = sbr.rel (%p273) target = $region40
      $region39: #{tpu_custom_call.1} parent=5 // pred_region
        // Predicated region
        $region41: #{tpu_custom_call.1} parent=39 // pred_check
          %p276 = pneg %p41
        $region42: #{tpu_custom_call.1} parent=39 // pred_check_branch
          %278 = sbr.rel (%p276) target = $region44
        $region43: #{tpu_custom_call.1} parent=39 // pred_region
          %s279 = sand.u32 %s31, 1
          %s280 = scalar_lea.sflag [#allocation3], %s279
          %s281 = sand.u32 %s31, 1
          %s282 = smul.addr %s281, 8
          %s283 = scalar_lea.vmem [#allocation2], %s282
          %285 = vsyncadd %s280, 0
          %s286 = smul.addr %s21, 8
          %s287 = scalar_lea.hbm %s0, %s286
          %s289 = sshll.u32 %s287, 4
          %s290 = int_to_ptr.hbm [resolvable:$true] %s289
          %s291 = sshll.u32 %s283, 4
          %s292 = int_to_ptr.vmem [resolvable:$true] %s291
          %294 = dma.hbm_to_vmem [thread:$0]  %s290, 128, %s292, %s280
        $region44: #{tpu_custom_call.1} parent=39 // pred_fallthru
          _
      $region40: #{tpu_custom_call.1} parent=5 // pred_fallthru
        _
      %p295 = scmp.le.s32.totalorder 1, %s21
      %p296 = scmp.lt.s32.totalorder %s21, 3
      %p297 = pnand %p295, %p296
      %p298 = pneg %p297
      // Predicated region
      $region45: #{tpu_custom_call.1} parent=5 // pred_check
        _
      $region46: #{tpu_custom_call.1} parent=5 // pred_check_branch
        %300 = sbr.rel (%p297) target = $region48
      $region47: #{tpu_custom_call.1} parent=5 // pred_region
        %s301 = ssub.s32 %s21, 1
        %s302 = sand.u32 %s34, 1
        %s303 = scalar_lea.sflag [#allocation3], %s302
        %s304 = sand.u32 %s34, 1
        %s305 = smul.addr %s304, 8
        %s306 = scalar_lea.vmem [#allocation2], %s305
        // Predicated region
        $region49: #{tpu_custom_call.1} parent=47 // pred_check
          %p307 = pneg %p47
        $region50: #{tpu_custom_call.1} parent=47 // pred_check_branch
          %309 = sbr.rel (%p307) target = $region52
        $region51: #{tpu_custom_call.1} parent=47 // pred_region
          %311 = dma.done %s303, 128
        $region52: #{tpu_custom_call.1} parent=47 // pred_fallthru
          _
        // Predicated region
        $region53: #{tpu_custom_call.1} parent=47 // pred_check
          %p312 = pneg %p68
        $region54: #{tpu_custom_call.1} parent=47 // pred_check_branch
          %314 = sbr.rel (%p312) target = $region56
        $region55: #{tpu_custom_call.1} parent=47 // pred_region
          %316 = dma.done [#allocation6], 512
        $region56: #{tpu_custom_call.1} parent=47 // pred_fallthru
          _
        // Predicated region
        $region57: #{tpu_custom_call.1} parent=47 // pred_check
          %p317 = pneg %p110
        $region58: #{tpu_custom_call.1} parent=47 // pred_check_branch
          %319 = sbr.rel (%p317) target = $region60
        $region59: #{tpu_custom_call.1} parent=47 // pred_region
          %321 = dma.done [#allocation6], 64
        $region60: #{tpu_custom_call.1} parent=47 // pred_fallthru
          _
        // Predicated region
        $region61: #{tpu_custom_call.1} parent=47 // pred_check
          %p322 = pneg %p131
        $region62: #{tpu_custom_call.1} parent=47 // pred_check_branch
          %324 = sbr.rel (%p322) target = $region64
        $region63: #{tpu_custom_call.1} parent=47 // pred_region
          %326 = dma.done [#allocation9], 64
        $region64: #{tpu_custom_call.1} parent=47 // pred_fallthru
          _
        // Predicated region
        $region65: #{tpu_custom_call.1} parent=47 // pred_check
          %p327 = pneg %p152
        $region66: #{tpu_custom_call.1} parent=47 // pred_check_branch
          %329 = sbr.rel (%p327) target = $region68
        $region67: #{tpu_custom_call.1} parent=47 // pred_region
          %331 = dma.done [#allocation9], 512
        $region68: #{tpu_custom_call.1} parent=47 // pred_fallthru
          _
        %s332 = sand.u32 %s34, 1
        %s333 = scalar_lea.sflag [#allocation3], %s332
        %s334 = sand.u32 %s34, 1
        %s335 = smul.addr %s334, 8
        %s336 = scalar_lea.vmem [#allocation2], %s335
        %p337 = pneg %p47
        %p338 = pneg %p44
        %p339 = pneg %p68
        %p340 = pneg %p65
        %p341 = pneg %p89
        %p342 = pneg %p86
        %p343 = pneg %p110
        %p344 = pneg %p107
        %p345 = pneg %p131
        %p346 = pneg %p128
        %p347 = pneg %p152
        %p348 = pneg %p149
        %p349 = pneg %p173
        %p350 = pneg %p170
        %p351 = pneg %p199
        %p352 = pneg %p196
        %s353 = sand.u32 %s186, 1
        %s354 = scalar_lea.sflag [#allocation4], %s353
        %s355 = sand.u32 %s186, 1
        %s356 = smul.addr %s355, 8
        %s357 = scalar_lea.vmem [#allocation11], %s356
        %v358 = vld [vmem:[%s306] sm:$0xff]
        %v359 = vld [vmem:[#allocation5] sm:$0xff]
        %v360 = vld [vmem:[#allocation5 + $0x8] sm:$0xff]
        %v361 = vld [vmem:[#allocation5 + $0x10] sm:$0xff]
        %v362 = vld [vmem:[#allocation5 + $0x18] sm:$0xff]
        %v363 = vld [vmem:[%s2] sm:$0x1]
        %v365 = vperm.slane %v363, 0
        %vm367 = vcmask 261120
        %v369 = vsel %vm367, %v358, 0
        %371 = vmatpush.msra.mxu0 0.0
        %372 = vmatpush.msra.mxu0 0.0
        %373 = vmatpush.msra.mxu0 0.0
        %374 = vmatpush.msra.mxu0 0.0
        %375 = vmatpush.msra.mxu0 0.0
        %376 = vmatpush.msra.mxu0 0.0
        %377 = vmatpush.msra.mxu0 0.0
        %378 = vmatpush.msra.mxu0 0.0
        %379 = vmatpush.msra.mxu0 0.0
        %380 = vmatpush.msra.mxu0 0.0
        %381 = vmatpush.msra.mxu0 0.0
        %382 = vmatpush.msra.mxu0 0.0
        %383 = vmatpush.msra.mxu0 %v362
        %384 = vmatpush.msra.mxu0 %v361
        %385 = vmatpush.msra.mxu0 %v360
        %386 = vmatpush.msra.mxu0 %v359
        %387 = vmatmul.f32.gmra.mxu0 %v369
        %v388 = vpop.f32.mrf.mxu0
        %v389 = vadd.f32 %v365, %v388
        %390 = vdwg.mxu0
        %v391 = vld [vmem:[#allocation7] sm:$0xf]
        %393 = vrot.lane.b32.xlu0 %v389, 32
        %v394 = vpop.permute.xlu0 %393
        %vm395 = vcmask 31744
        %v396 = vsel %vm395, %v394, 0
        %vm398 = vcmask 1043456
        %v400 = vsel %vm398, %v391, 0
        %402 = vmatpush.msra.mxu0 0.0
        %403 = vmatpush.msra.mxu0 0.0
        %404 = vmatpush.msra.mxu0 0.0
        %405 = vmatpush.msra.mxu0 0.0
        %406 = vmatpush.msra.mxu0 0.0
        %407 = vmatpush.msra.mxu0 0.0
        %408 = vmatpush.msra.mxu0 0.0
        %409 = vmatpush.msra.mxu0 0.0
        %410 = vmatpush.msra.mxu0 0.0
        %411 = vmatpush.msra.mxu0 0.0
        %412 = vmatpush.msra.mxu0 0.0
        %413 = vmatpush.msra.mxu0 0.0
        %414 = vmatpush.msra.mxu0 0.0
        %415 = vmatpush.msra.mxu0 0.0
        %416 = vmatpush.msra.mxu0 0.0
        %417 = vmatpush.msra.mxu0 %v400
        %418 = vmatmul.f32.gmra.mxu0 %v396
        %v419 = vpop.f32.mrf.mxu0
        %v420 = vadd.f32 0.0, %v419
        %421 = vdwg.mxu0
        %v422 = vld [vmem:[#allocation8] sm:$0xf]
        %423 = vrot.lane.b32.xlu0 %v389, 28
        %v424 = vpop.permute.xlu0 %423
        %v425 = vsel %vm395, %v424, 0
        %v428 = vsel %vm398, %v422, 0
        %430 = vmatpush.msra.mxu0 0.0
        %431 = vmatpush.msra.mxu0 0.0
        %432 = vmatpush.msra.mxu0 0.0
        %433 = vmatpush.msra.mxu0 0.0
        %434 = vmatpush.msra.mxu0 0.0
        %435 = vmatpush.msra.mxu0 0.0
        %436 = vmatpush.msra.mxu0 0.0
        %437 = vmatpush.msra.mxu0 0.0
        %438 = vmatpush.msra.mxu0 0.0
        %439 = vmatpush.msra.mxu0 0.0
        %440 = vmatpush.msra.mxu0 0.0
        %441 = vmatpush.msra.mxu0 0.0
        %442 = vmatpush.msra.mxu0 0.0
        %443 = vmatpush.msra.mxu0 0.0
        %444 = vmatpush.msra.mxu0 0.0
        %445 = vmatpush.msra.mxu0 %v428
        %446 = vmatmul.f32.gmra.mxu0 %v425
        %v447 = vpop.f32.mrf.mxu0
        %v448 = vadd.f32 0.0, %v447
        %449 = vdwg.mxu0
        %v450 = vadd.f32 %v389, %v420
        %452 = vrot.lane.b32.xlu0 %v448, 64
        %v453 = vpop.permute.xlu0 %452
        %v455 = vadd.f32 %v389, %v453
        %457 = vrot.lane.b32.xlu0 %v450, 120
        %v458 = vpop.permute.xlu0 %457
        %460 = vrot.lane.b32.xlu0 %v450, 112
        %v461 = vpop.permute.xlu0 %460
        %463 = vrot.lane.b32.xlu0 %v450, 104
        %v464 = vpop.permute.xlu0 %463
        %v466 = vrot.slane %v461, 4
        %vm467 = vcmask 1047556
        %v468 = vsel %vm467, %v466, %v450
        %v469 = vrot.slane %v450, 4
        %v470 = vsel %vm467, %v461, %v469
        %v472 = vunpack.c.l.s4 1983009808
        %v473 = vunpack.c.0.s8 %v472
        %v474 = vperm.slane %v468, %v473
        %v476 = vunpack.c.l.s4 1983009808
        %v477 = vunpack.c.0.s8 %v476
        %v478 = vperm.slane %v470, %v477
        %v479 = vrot.slane %v464, 4
        %v480 = vsel %vm467, %v479, %v458
        %v481 = vrot.slane %v458, 4
        %v482 = vsel %vm467, %v464, %v481
        %v484 = vunpack.c.l.s4 1983009808
        %v485 = vunpack.c.0.s8 %v484
        %v486 = vperm.slane %v480, %v485
        %v488 = vunpack.c.l.s4 1983009808
        %v489 = vunpack.c.0.s8 %v488
        %v490 = vperm.slane %v482, %v489
        %v491 = vrot.slane %v486, 4
        %v492 = vsel %vm467, %v491, %v474
        %v493 = vrot.slane %v474, 4
        %v494 = vsel %vm467, %v486, %v493
        %v496 = vunpack.c.l.s4 1934713408
        %v497 = vunpack.c.0.s8 %v496
        %v498 = vperm.slane %v492, %v497
        %v500 = vunpack.c.l.s4 1934713408
        %v501 = vunpack.c.0.s8 %v500
        %v502 = vperm.slane %v494, %v501
        %v503 = vrot.slane %v490, 4
        %v504 = vsel %vm467, %v503, %v478
        %v505 = vrot.slane %v478, 4
        %v506 = vsel %vm467, %v490, %v505
        %v508 = vunpack.c.l.s4 1934713408
        %v509 = vunpack.c.0.s8 %v508
        %v510 = vperm.slane %v504, %v509
        %v512 = vunpack.c.l.s4 1934713408
        %v513 = vunpack.c.0.s8 %v512
        %v514 = vperm.slane %v506, %v513
        %v515 = vrot.slane %v498, 4
        %v516 = vsel %vm467, 0.0, %v515
        %v517 = vrot.slane %v502, 4
        %v518 = vsel %vm467, 0.0, %v517
        %v519 = vrot.slane %v510, 4
        %v520 = vsel %vm467, 0.0, %v519
        %v521 = vrot.slane %v514, 4
        %v522 = vsel %vm467, 0.0, %v521
        %v523 = vsel %vm467, %v517, %v498
        %v525 = vunpack.c.l.s4 1983009808
        %v526 = vunpack.c.0.s8 %v525
        %v527 = vperm.slane %v523, %v526
        %v528 = vrot.slane %v518, 4
        %v529 = vsel %vm467, %v528, %v516
        %v531 = vunpack.c.l.s4 1983009808
        %v532 = vunpack.c.0.s8 %v531
        %v533 = vperm.slane %v529, %v532
        %v534 = vsel %vm467, %v521, %v510
        %v536 = vunpack.c.l.s4 1983009808
        %v537 = vunpack.c.0.s8 %v536
        %v538 = vperm.slane %v534, %v537
        %v539 = vrot.slane %v522, 4
        %v540 = vsel %vm467, %v539, %v520
        %v542 = vunpack.c.l.s4 1983009808
        %v543 = vunpack.c.0.s8 %v542
        %v544 = vperm.slane %v540, %v543
        %v545 = vrot.slane %v533, 4
        %v546 = vsel %vm467, %v545, %v527
        %v547 = vrot.slane %v527, 4
        %v548 = vsel %vm467, %v533, %v547
        %v550 = vunpack.c.l.s4 1934713408
        %v551 = vunpack.c.0.s8 %v550
        %v552 = vperm.slane %v546, %v551
        %v554 = vunpack.c.l.s4 1934713408
        %v555 = vunpack.c.0.s8 %v554
        %v556 = vperm.slane %v548, %v555
        %v557 = vrot.slane %v544, 4
        %v558 = vsel %vm467, %v557, %v538
        %v559 = vrot.slane %v538, 4
        %v560 = vsel %vm467, %v544, %v559
        %v562 = vunpack.c.l.s4 1934713408
        %v563 = vunpack.c.0.s8 %v562
        %v564 = vperm.slane %v558, %v563
        %v566 = vunpack.c.l.s4 1934713408
        %v567 = vunpack.c.0.s8 %v566
        %v568 = vperm.slane %v560, %v567
        %v569 = vrot.slane %v564, 4
        %v570 = vsel %vm467, %v569, %v552
        %v571 = vrot.slane %v552, 4
        %v572 = vsel %vm467, %v564, %v571
        %v573 = vrot.slane %v568, 4
        %v574 = vsel %vm467, %v573, %v556
        %v575 = vrot.slane %v556, 4
        %v576 = vsel %vm467, %v568, %v575
        %577 = vrot.lane.b32.xlu0 %v389, 120
        %v578 = vpop.permute.xlu0 %577
        %579 = vrot.lane.b32.xlu0 %v389, 112
        %v580 = vpop.permute.xlu0 %579
        %581 = vrot.lane.b32.xlu0 %v389, 104
        %v582 = vpop.permute.xlu0 %581
        %583 = vrot.lane.b32.xlu0 %v389, 96
        %v584 = vpop.permute.xlu0 %583
        %585 = vrot.lane.b32.xlu0 %v578, 96
        %v586 = vpop.permute.xlu0 %585
        %587 = vrot.lane.b32.xlu0 %v580, 96
        %v588 = vpop.permute.xlu0 %587
        %589 = vrot.lane.b32.xlu0 %v582, 96
        %v590 = vpop.permute.xlu0 %589
        %v595 = vrot.slane %v588, 4
        %v596 = vsel %vm467, %v595, %v584
        %v597 = vrot.slane %v584, 4
        %v598 = vsel %vm467, %v588, %v597
        %v600 = vunpack.c.l.s4 1983009808
        %v601 = vunpack.c.0.s8 %v600
        %v602 = vperm.slane %v596, %v601
        %v604 = vunpack.c.l.s4 1983009808
        %v605 = vunpack.c.0.s8 %v604
        %v606 = vperm.slane %v598, %v605
        %v607 = vrot.slane %v590, 4
        %v608 = vsel %vm467, %v607, %v586
        %v609 = vrot.slane %v586, 4
        %v610 = vsel %vm467, %v590, %v609
        %v612 = vunpack.c.l.s4 1983009808
        %v613 = vunpack.c.0.s8 %v612
        %v614 = vperm.slane %v608, %v613
        %v616 = vunpack.c.l.s4 1983009808
        %v617 = vunpack.c.0.s8 %v616
        %v618 = vperm.slane %v610, %v617
        %v619 = vrot.slane %v614, 4
        %v620 = vsel %vm467, %v619, %v602
        %v621 = vrot.slane %v602, 4
        %v622 = vsel %vm467, %v614, %v621
        %v624 = vunpack.c.l.s4 1934713408
        %v625 = vunpack.c.0.s8 %v624
        %v626 = vperm.slane %v620, %v625
        %v628 = vunpack.c.l.s4 1934713408
        %v629 = vunpack.c.0.s8 %v628
        %v630 = vperm.slane %v622, %v629
        %v631 = vrot.slane %v618, 4
        %v632 = vsel %vm467, %v631, %v606
        %v633 = vrot.slane %v606, 4
        %v634 = vsel %vm467, %v618, %v633
        %v636 = vunpack.c.l.s4 1934713408
        %v637 = vunpack.c.0.s8 %v636
        %v638 = vperm.slane %v632, %v637
        %v640 = vunpack.c.l.s4 1934713408
        %v641 = vunpack.c.0.s8 %v640
        %v642 = vperm.slane %v634, %v641
        %v643 = vrot.slane %v626, 4
        %v644 = vsel %vm467, 0.0, %v643
        %v645 = vrot.slane %v630, 4
        %v646 = vsel %vm467, 0.0, %v645
        %v647 = vrot.slane %v638, 4
        %v648 = vsel %vm467, 0.0, %v647
        %v649 = vrot.slane %v642, 4
        %v650 = vsel %vm467, 0.0, %v649
        %v651 = vsel %vm467, %v645, %v626
        %v653 = vunpack.c.l.s4 1983009808
        %v654 = vunpack.c.0.s8 %v653
        %v655 = vperm.slane %v651, %v654
        %v656 = vrot.slane %v646, 4
        %v657 = vsel %vm467, %v656, %v644
        %v659 = vunpack.c.l.s4 1983009808
        %v660 = vunpack.c.0.s8 %v659
        %v661 = vperm.slane %v657, %v660
        %v662 = vsel %vm467, %v649, %v638
        %v664 = vunpack.c.l.s4 1983009808
        %v665 = vunpack.c.0.s8 %v664
        %v666 = vperm.slane %v662, %v665
        %v667 = vrot.slane %v650, 4
        %v668 = vsel %vm467, %v667, %v648
        %v670 = vunpack.c.l.s4 1983009808
        %v671 = vunpack.c.0.s8 %v670
        %v672 = vperm.slane %v668, %v671
        %v673 = vrot.slane %v661, 4
        %v674 = vsel %vm467, %v673, %v655
        %v675 = vrot.slane %v655, 4
        %v676 = vsel %vm467, %v661, %v675
        %v678 = vunpack.c.l.s4 1934713408
        %v679 = vunpack.c.0.s8 %v678
        %v680 = vperm.slane %v674, %v679
        %v682 = vunpack.c.l.s4 1934713408
        %v683 = vunpack.c.0.s8 %v682
        %v684 = vperm.slane %v676, %v683
        %v685 = vrot.slane %v672, 4
        %v686 = vsel %vm467, %v685, %v666
        %v687 = vrot.slane %v666, 4
        %v688 = vsel %vm467, %v672, %v687
        %v690 = vunpack.c.l.s4 1934713408
        %v691 = vunpack.c.0.s8 %v690
        %v692 = vperm.slane %v686, %v691
        %v694 = vunpack.c.l.s4 1934713408
        %v695 = vunpack.c.0.s8 %v694
        %v696 = vperm.slane %v688, %v695
        %v697 = vrot.slane %v692, 4
        %v698 = vsel %vm467, %v697, %v680
        %v699 = vrot.slane %v680, 4
        %v700 = vsel %vm467, %v692, %v699
        %v701 = vrot.slane %v696, 4
        %v702 = vsel %vm467, %v701, %v684
        %v703 = vrot.slane %v684, 4
        %v704 = vsel %vm467, %v696, %v703
        %706 = vrot.lane.b32.xlu0 %v455, 120
        %v707 = vpop.permute.xlu0 %706
        %708 = vrot.lane.b32.xlu0 %v455, 112
        %v709 = vpop.permute.xlu0 %708
        %710 = vrot.lane.b32.xlu0 %v455, 104
        %v711 = vpop.permute.xlu0 %710
        %712 = vrot.lane.b32.xlu0 %v455, 64
        %v713 = vpop.permute.xlu0 %712
        %714 = vrot.lane.b32.xlu0 %v707, 64
        %v715 = vpop.permute.xlu0 %714
        %716 = vrot.lane.b32.xlu0 %v709, 64
        %v717 = vpop.permute.xlu0 %716
        %718 = vrot.lane.b32.xlu0 %v711, 64
        %v719 = vpop.permute.xlu0 %718
        %v724 = vrot.slane %v717, 4
        %v725 = vsel %vm467, %v724, %v713
        %v726 = vrot.slane %v713, 4
        %v727 = vsel %vm467, %v717, %v726
        %v729 = vunpack.c.l.s4 1983009808
        %v730 = vunpack.c.0.s8 %v729
        %v731 = vperm.slane %v725, %v730
        %v733 = vunpack.c.l.s4 1983009808
        %v734 = vunpack.c.0.s8 %v733
        %v735 = vperm.slane %v727, %v734
        %v736 = vrot.slane %v719, 4
        %v737 = vsel %vm467, %v736, %v715
        %v738 = vrot.slane %v715, 4
        %v739 = vsel %vm467, %v719, %v738
        %v741 = vunpack.c.l.s4 1983009808
        %v742 = vunpack.c.0.s8 %v741
        %v743 = vperm.slane %v737, %v742
        %v745 = vunpack.c.l.s4 1983009808
        %v746 = vunpack.c.0.s8 %v745
        %v747 = vperm.slane %v739, %v746
        %v748 = vrot.slane %v743, 4
        %v749 = vsel %vm467, %v748, %v731
        %v750 = vrot.slane %v731, 4
        %v751 = vsel %vm467, %v743, %v750
        %v753 = vunpack.c.l.s4 1934713408
        %v754 = vunpack.c.0.s8 %v753
        %v755 = vperm.slane %v749, %v754
        %v757 = vunpack.c.l.s4 1934713408
        %v758 = vunpack.c.0.s8 %v757
        %v759 = vperm.slane %v751, %v758
        %v760 = vrot.slane %v747, 4
        %v761 = vsel %vm467, %v760, %v735
        %v762 = vrot.slane %v735, 4
        %v763 = vsel %vm467, %v747, %v762
        %v765 = vunpack.c.l.s4 1934713408
        %v766 = vunpack.c.0.s8 %v765
        %v767 = vperm.slane %v761, %v766
        %v769 = vunpack.c.l.s4 1934713408
        %v770 = vunpack.c.0.s8 %v769
        %v771 = vperm.slane %v763, %v770
        %v772 = vrot.slane %v755, 4
        %v773 = vsel %vm467, 0.0, %v772
        %v774 = vrot.slane %v759, 4
        %v775 = vsel %vm467, 0.0, %v774
        %v776 = vrot.slane %v767, 4
        %v777 = vsel %vm467, 0.0, %v776
        %v778 = vrot.slane %v771, 4
        %v779 = vsel %vm467, 0.0, %v778
        %v780 = vsel %vm467, %v774, %v755
        %v782 = vunpack.c.l.s4 1983009808
        %v783 = vunpack.c.0.s8 %v782
        %v784 = vperm.slane %v780, %v783
        %v785 = vrot.slane %v775, 4
        %v786 = vsel %vm467, %v785, %v773
        %v788 = vunpack.c.l.s4 1983009808
        %v789 = vunpack.c.0.s8 %v788
        %v790 = vperm.slane %v786, %v789
        %v791 = vsel %vm467, %v778, %v767
        %v793 = vunpack.c.l.s4 1983009808
        %v794 = vunpack.c.0.s8 %v793
        %v795 = vperm.slane %v791, %v794
        %v796 = vrot.slane %v779, 4
        %v797 = vsel %vm467, %v796, %v777
        %v799 = vunpack.c.l.s4 1983009808
        %v800 = vunpack.c.0.s8 %v799
        %v801 = vperm.slane %v797, %v800
        %v802 = vrot.slane %v790, 4
        %v803 = vsel %vm467, %v802, %v784
        %v804 = vrot.slane %v784, 4
        %v805 = vsel %vm467, %v790, %v804
        %v807 = vunpack.c.l.s4 1934713408
        %v808 = vunpack.c.0.s8 %v807
        %v809 = vperm.slane %v803, %v808
        %v811 = vunpack.c.l.s4 1934713408
        %v812 = vunpack.c.0.s8 %v811
        %v813 = vperm.slane %v805, %v812
        %v814 = vrot.slane %v801, 4
        %v815 = vsel %vm467, %v814, %v795
        %v816 = vrot.slane %v795, 4
        %v817 = vsel %vm467, %v801, %v816
        %v819 = vunpack.c.l.s4 1934713408
        %v820 = vunpack.c.0.s8 %v819
        %v821 = vperm.slane %v815, %v820
        %v823 = vunpack.c.l.s4 1934713408
        %v824 = vunpack.c.0.s8 %v823
        %v825 = vperm.slane %v817, %v824
        %v826 = vrot.slane %v821, 4
        %v827 = vsel %vm467, %v826, %v809
        %v828 = vrot.slane %v809, 4
        %v829 = vsel %vm467, %v821, %v828
        %v830 = vrot.slane %v825, 4
        %v831 = vsel %vm467, %v830, %v813
        %v832 = vrot.slane %v813, 4
        %v833 = vsel %vm467, %v825, %v832
        %vm834 = vcmask 64512
        %v836 = vsel %vm834, %v570, 0
        %v839 = vsel %vm834, %v698, 0
        %841 = vmatpush.xpose.msra.mxu0 0.0
        %842 = vmatpush.xpose.msra.mxu0 0.0
        %843 = vmatpush.xpose.msra.mxu0 0.0
        %844 = vmatpush.xpose.msra.mxu0 0.0
        %845 = vmatpush.xpose.msra.mxu0 0.0
        %846 = vmatpush.xpose.msra.mxu0 0.0
        %847 = vmatpush.xpose.msra.mxu0 0.0
        %848 = vmatpush.xpose.msra.mxu0 0.0
        %849 = vmatpush.xpose.msra.mxu0 0.0
        %850 = vmatpush.xpose.msra.mxu0 0.0
        %851 = vmatpush.xpose.msra.mxu0 0.0
        %852 = vmatpush.xpose.msra.mxu0 0.0
        %853 = vmatpush.xpose.msra.mxu0 0.0
        %854 = vmatpush.xpose.msra.mxu0 0.0
        %855 = vmatpush.xpose.msra.mxu0 0.0
        %856 = vmatpush.xpose.msra.mxu0 %v839
        %857 = vmatmul.f32.gmra.mxu0 %v836
        %v858 = vpop.f32.mrf.mxu0
        %v859 = vadd.f32 0.0, %v858
        %860 = vdwg.mxu0
        %v862 = vsel %vm834, %v572, 0
        %v865 = vsel %vm834, %v700, 0
        %867 = vmatpush.xpose.msra.mxu0 0.0
        %868 = vmatpush.xpose.msra.mxu0 0.0
        %869 = vmatpush.xpose.msra.mxu0 0.0
        %870 = vmatpush.xpose.msra.mxu0 0.0
        %871 = vmatpush.xpose.msra.mxu0 0.0
        %872 = vmatpush.xpose.msra.mxu0 0.0
        %873 = vmatpush.xpose.msra.mxu0 0.0
        %874 = vmatpush.xpose.msra.mxu0 0.0
        %875 = vmatpush.xpose.msra.mxu0 0.0
        %876 = vmatpush.xpose.msra.mxu0 0.0
        %877 = vmatpush.xpose.msra.mxu0 0.0
        %878 = vmatpush.xpose.msra.mxu0 0.0
        %879 = vmatpush.xpose.msra.mxu0 0.0
        %880 = vmatpush.xpose.msra.mxu0 0.0
        %881 = vmatpush.xpose.msra.mxu0 0.0
        %882 = vmatpush.xpose.msra.mxu0 %v865
        %883 = vmatmul.f32.gmra.mxu0 %v862
        %v884 = vpop.f32.mrf.mxu0
        %v885 = vadd.f32 0.0, %v884
        %886 = vdwg.mxu0
        %v888 = vsel %vm834, %v574, 0
        %v891 = vsel %vm834, %v702, 0
        %893 = vmatpush.xpose.msra.mxu0 0.0
        %894 = vmatpush.xpose.msra.mxu0 0.0
        %895 = vmatpush.xpose.msra.mxu0 0.0
        %896 = vmatpush.xpose.msra.mxu0 0.0
        %897 = vmatpush.xpose.msra.mxu0 0.0
        %898 = vmatpush.xpose.msra.mxu0 0.0
        %899 = vmatpush.xpose.msra.mxu0 0.0
        %900 = vmatpush.xpose.msra.mxu0 0.0
        %901 = vmatpush.xpose.msra.mxu0 0.0
        %902 = vmatpush.xpose.msra.mxu0 0.0
        %903 = vmatpush.xpose.msra.mxu0 0.0
        %904 = vmatpush.xpose.msra.mxu0 0.0
        %905 = vmatpush.xpose.msra.mxu0 0.0
        %906 = vmatpush.xpose.msra.mxu0 0.0
        %907 = vmatpush.xpose.msra.mxu0 0.0
        %908 = vmatpush.xpose.msra.mxu0 %v891
        %909 = vmatmul.f32.gmra.mxu0 %v888
        %v910 = vpop.f32.mrf.mxu0
        %v911 = vadd.f32 0.0, %v910
        %912 = vdwg.mxu0
        %v914 = vsel %vm834, %v576, 0
        %v917 = vsel %vm834, %v704, 0
        %919 = vmatpush.xpose.msra.mxu0 0.0
        %920 = vmatpush.xpose.msra.mxu0 0.0
        %921 = vmatpush.xpose.msra.mxu0 0.0
        %922 = vmatpush.xpose.msra.mxu0 0.0
        %923 = vmatpush.xpose.msra.mxu0 0.0
        %924 = vmatpush.xpose.msra.mxu0 0.0
        %925 = vmatpush.xpose.msra.mxu0 0.0
        %926 = vmatpush.xpose.msra.mxu0 0.0
        %927 = vmatpush.xpose.msra.mxu0 0.0
        %928 = vmatpush.xpose.msra.mxu0 0.0
        %929 = vmatpush.xpose.msra.mxu0 0.0
        %930 = vmatpush.xpose.msra.mxu0 0.0
        %931 = vmatpush.xpose.msra.mxu0 0.0
        %932 = vmatpush.xpose.msra.mxu0 0.0
        %933 = vmatpush.xpose.msra.mxu0 0.0
        %934 = vmatpush.xpose.msra.mxu0 %v917
        %935 = vmatmul.f32.gmra.mxu0 %v914
        %v936 = vpop.f32.mrf.mxu0
        %v937 = vadd.f32 0.0, %v936
        %938 = vdwg.mxu0
        %v939 = vsel %vm834, %v859, -inf
        %940 = vmax.xlane.f32.xlu0 %v939
        %v941 = vpop.xlane.xlu0 %940
        %v942 = vsel %vm834, %v885, -inf
        %943 = vmax.xlane.f32.xlu0 %v942
        %v944 = vpop.xlane.xlu0 %943
        %v945 = vsel %vm834, %v911, -inf
        %946 = vmax.xlane.f32.xlu0 %v945
        %v947 = vpop.xlane.xlu0 %946
        %v948 = vsel %vm834, %v937, -inf
        %949 = vmax.xlane.f32.xlu0 %v948
        %v950 = vpop.xlane.xlu0 %949
        %v951 = vsub.f32 %v859, %v941
        %v952 = vsub.f32 %v885, %v944
        %v953 = vsub.f32 %v911, %v947
        %v954 = vsub.f32 %v937, %v950
        %v955 = vmul.f32 %v951, 1.442695
        %v956 = vpow.pop %v955
        %v957 = vmul.f32 %v952, 1.442695
        %v958 = vpow.pop %v957
        %v959 = vmul.f32 %v953, 1.442695
        %v960 = vpow.pop %v959
        %v961 = vmul.f32 %v954, 1.442695
        %v962 = vpow.pop %v961
        %v963 = vsel %vm834, %v956, 0.0
        %964 = vadd.xlane.f32.xlu0 %v963
        %v965 = vpop.xlane.xlu0 %964
        %v966 = vsel %vm834, %v958, 0.0
        %967 = vadd.xlane.f32.xlu0 %v966
        %v968 = vpop.xlane.xlu0 %967
        %v969 = vsel %vm834, %v960, 0.0
        %970 = vadd.xlane.f32.xlu0 %v969
        %v971 = vpop.xlane.xlu0 %970
        %v972 = vsel %vm834, %v962, 0.0
        %973 = vadd.xlane.f32.xlu0 %v972
        %v974 = vpop.xlane.xlu0 %973
        %v976 = vsel %vm834, %v956, 0
        %978 = vmatpush.msra.mxu0 0.0
        %979 = vmatpush.msra.mxu0 0.0
        %980 = vmatpush.msra.mxu0 0.0
        %981 = vmatpush.msra.mxu0 0.0
        %982 = vmatpush.msra.mxu0 0.0
        %983 = vmatpush.msra.mxu0 0.0
        %984 = vmatpush.msra.mxu0 0.0
        %985 = vmatpush.msra.mxu0 0.0
        %986 = vmatpush.msra.mxu0 0.0
        %987 = vmatpush.msra.mxu0 0.0
        %988 = vmatpush.msra.mxu0 0.0
        %989 = vmatpush.msra.mxu0 0.0
        %990 = vmatpush.msra.mxu0 0.0
        %991 = vmatpush.msra.mxu0 0.0
        %992 = vmatpush.msra.mxu0 0.0
        %993 = vmatpush.msra.mxu0 %v827
        %994 = vmatmul.f32.gmra.mxu0 %v976
        %v995 = vpop.f32.mrf.mxu0
        %v996 = vadd.f32 0.0, %v995
        %997 = vdwg.mxu0
        %v999 = vsel %vm834, %v958, 0
        %1001 = vmatpush.msra.mxu0 0.0
        %1002 = vmatpush.msra.mxu0 0.0
        %1003 = vmatpush.msra.mxu0 0.0
        %1004 = vmatpush.msra.mxu0 0.0
        %1005 = vmatpush.msra.mxu0 0.0
        %1006 = vmatpush.msra.mxu0 0.0
        %1007 = vmatpush.msra.mxu0 0.0
        %1008 = vmatpush.msra.mxu0 0.0
        %1009 = vmatpush.msra.mxu0 0.0
        %1010 = vmatpush.msra.mxu0 0.0
        %1011 = vmatpush.msra.mxu0 0.0
        %1012 = vmatpush.msra.mxu0 0.0
        %1013 = vmatpush.msra.mxu0 0.0
        %1014 = vmatpush.msra.mxu0 0.0
        %1015 = vmatpush.msra.mxu0 0.0
        %1016 = vmatpush.msra.mxu0 %v829
        %1017 = vmatmul.f32.gmra.mxu0 %v999
        %v1018 = vpop.f32.mrf.mxu0
        %v1019 = vadd.f32 0.0, %v1018
        %1020 = vdwg.mxu0
        %v1022 = vsel %vm834, %v960, 0
        %1024 = vmatpush.msra.mxu0 0.0
        %1025 = vmatpush.msra.mxu0 0.0
        %1026 = vmatpush.msra.mxu0 0.0
        %1027 = vmatpush.msra.mxu0 0.0
        %1028 = vmatpush.msra.mxu0 0.0
        %1029 = vmatpush.msra.mxu0 0.0
        %1030 = vmatpush.msra.mxu0 0.0
        %1031 = vmatpush.msra.mxu0 0.0
        %1032 = vmatpush.msra.mxu0 0.0
        %1033 = vmatpush.msra.mxu0 0.0
        %1034 = vmatpush.msra.mxu0 0.0
        %1035 = vmatpush.msra.mxu0 0.0
        %1036 = vmatpush.msra.mxu0 0.0
        %1037 = vmatpush.msra.mxu0 0.0
        %1038 = vmatpush.msra.mxu0 0.0
        %1039 = vmatpush.msra.mxu0 %v831
        %1040 = vmatmul.f32.gmra.mxu0 %v1022
        %v1041 = vpop.f32.mrf.mxu0
        %v1042 = vadd.f32 0.0, %v1041
        %1043 = vdwg.mxu0
        %v1045 = vsel %vm834, %v962, 0
        %1047 = vmatpush.msra.mxu0 0.0
        %1048 = vmatpush.msra.mxu0 0.0
        %1049 = vmatpush.msra.mxu0 0.0
        %1050 = vmatpush.msra.mxu0 0.0
        %1051 = vmatpush.msra.mxu0 0.0
        %1052 = vmatpush.msra.mxu0 0.0
        %1053 = vmatpush.msra.mxu0 0.0
        %1054 = vmatpush.msra.mxu0 0.0
        %1055 = vmatpush.msra.mxu0 0.0
        %1056 = vmatpush.msra.mxu0 0.0
        %1057 = vmatpush.msra.mxu0 0.0
        %1058 = vmatpush.msra.mxu0 0.0
        %1059 = vmatpush.msra.mxu0 0.0
        %1060 = vmatpush.msra.mxu0 0.0
        %1061 = vmatpush.msra.mxu0 0.0
        %1062 = vmatpush.msra.mxu0 %v833
        %1063 = vmatmul.f32.gmra.mxu0 %v1045
        %v1064 = vpop.f32.mrf.mxu0
        %v1065 = vadd.f32 0.0, %v1064
        %1066 = vdwg.mxu0
        %v1067 = vrcp.pop %v965
        %v1068 = vrcp.pop %v968
        %v1069 = vrcp.pop %v971
        %v1070 = vrcp.pop %v974
        %v1071 = vmul.f32 %v996, %v1067
        %v1072 = vmul.f32 %v1019, %v1068
        %v1073 = vmul.f32 %v1042, %v1069
        %v1074 = vmul.f32 %v1065, %v1070
        %v1075 = vrot.slane %v1073, 4
        %v1076 = vsel %vm467, %v1075, %v1071
        %v1077 = vrot.slane %v1071, 4
        %v1078 = vsel %vm467, %v1073, %v1077
        %v1080 = vunpack.c.l.s4 1983009808
        %v1081 = vunpack.c.0.s8 %v1080
        %v1082 = vperm.slane %v1076, %v1081
        %v1084 = vunpack.c.l.s4 1983009808
        %v1085 = vunpack.c.0.s8 %v1084
        %v1086 = vperm.slane %v1078, %v1085
        %v1087 = vrot.slane %v1074, 4
        %v1088 = vsel %vm467, %v1087, %v1072
        %v1089 = vrot.slane %v1072, 4
        %v1090 = vsel %vm467, %v1074, %v1089
        %v1092 = vunpack.c.l.s4 1983009808
        %v1093 = vunpack.c.0.s8 %v1092
        %v1094 = vperm.slane %v1088, %v1093
        %v1096 = vunpack.c.l.s4 1983009808
        %v1097 = vunpack.c.0.s8 %v1096
        %v1098 = vperm.slane %v1090, %v1097
        %v1099 = vrot.slane %v1094, 4
        %v1100 = vsel %vm467, %v1099, %v1082
        %v1101 = vrot.slane %v1082, 4
        %v1102 = vsel %vm467, %v1094, %v1101
        %v1104 = vunpack.c.l.s4 1934713408
        %v1105 = vunpack.c.0.s8 %v1104
        %v1106 = vperm.slane %v1100, %v1105
        %v1108 = vunpack.c.l.s4 1934713408
        %v1109 = vunpack.c.0.s8 %v1108
        %v1110 = vperm.slane %v1102, %v1109
        %v1111 = vrot.slane %v1098, 4
        %v1112 = vsel %vm467, %v1111, %v1086
        %v1113 = vrot.slane %v1086, 4
        %v1114 = vsel %vm467, %v1098, %v1113
        %v1116 = vunpack.c.l.s4 1934713408
        %v1117 = vunpack.c.0.s8 %v1116
        %v1118 = vperm.slane %v1112, %v1117
        %v1120 = vunpack.c.l.s4 1934713408
        %v1121 = vunpack.c.0.s8 %v1120
        %v1122 = vperm.slane %v1114, %v1121
        %v1123 = vrot.slane %v1106, 4
        %v1124 = vsel %vm467, 0.0, %v1123
        %v1125 = vrot.slane %v1110, 4
        %v1126 = vsel %vm467, 0.0, %v1125
        %v1127 = vrot.slane %v1118, 4
        %v1128 = vsel %vm467, 0.0, %v1127
        %v1129 = vrot.slane %v1122, 4
        %v1130 = vsel %vm467, 0.0, %v1129
        %v1131 = vsel %vm467, %v1125, %v1106
        %v1133 = vunpack.c.l.s4 1983009808
        %v1134 = vunpack.c.0.s8 %v1133
        %v1135 = vperm.slane %v1131, %v1134
        %v1136 = vrot.slane %v1126, 4
        %v1137 = vsel %vm467, %v1136, %v1124
        %v1139 = vunpack.c.l.s4 1983009808
        %v1140 = vunpack.c.0.s8 %v1139
        %v1141 = vperm.slane %v1137, %v1140
        %v1142 = vsel %vm467, %v1129, %v1118
        %v1144 = vunpack.c.l.s4 1983009808
        %v1145 = vunpack.c.0.s8 %v1144
        %v1146 = vperm.slane %v1142, %v1145
        %v1147 = vrot.slane %v1130, 4
        %v1148 = vsel %vm467, %v1147, %v1128
        %v1150 = vunpack.c.l.s4 1983009808
        %v1151 = vunpack.c.0.s8 %v1150
        %v1152 = vperm.slane %v1148, %v1151
        %v1153 = vrot.slane %v1141, 4
        %v1154 = vsel %vm467, %v1153, %v1135
        %v1155 = vrot.slane %v1135, 4
        %v1156 = vsel %vm467, %v1141, %v1155
        %v1158 = vunpack.c.l.s4 1934713408
        %v1159 = vunpack.c.0.s8 %v1158
        %v1160 = vperm.slane %v1154, %v1159
        %v1162 = vunpack.c.l.s4 1934713408
        %v1163 = vunpack.c.0.s8 %v1162
        %v1164 = vperm.slane %v1156, %v1163
        %v1165 = vrot.slane %v1152, 4
        %v1166 = vsel %vm467, %v1165, %v1146
        %v1167 = vrot.slane %v1146, 4
        %v1168 = vsel %vm467, %v1152, %v1167
        %v1170 = vunpack.c.l.s4 1934713408
        %v1171 = vunpack.c.0.s8 %v1170
        %v1172 = vperm.slane %v1166, %v1171
        %v1174 = vunpack.c.l.s4 1934713408
        %v1175 = vunpack.c.0.s8 %v1174
        %v1176 = vperm.slane %v1168, %v1175
        %v1177 = vrot.slane %v1172, 4
        %v1178 = vsel %vm467, %v1177, %v1160
        %v1179 = vrot.slane %v1160, 4
        %v1180 = vsel %vm467, %v1172, %v1179
        %v1181 = vrot.slane %v1176, 4
        %v1182 = vsel %vm467, %v1181, %v1164
        %v1183 = vrot.slane %v1164, 4
        %v1184 = vsel %vm467, %v1176, %v1183
        %1186 = vrot.lane.b32.xlu0 %v1180, 8
        %v1187 = vpop.permute.xlu0 %1186
        %1190 = vrot.lane.b32.xlu0 %v1182, 16
        %v1191 = vpop.permute.xlu0 %1190
        %1194 = vrot.lane.b32.xlu0 %v1184, 24
        %v1195 = vpop.permute.xlu0 %1194
        %v1197 = vsel %vm834, %v1178, %v1187
        %vm1198 = vcmask 130048
        %v1199 = vsel %vm1198, %v1197, %v1191
        %vm1200 = vcmask 195584
        %v1201 = vsel %vm1200, %v1199, %v1195
        %v1202 = vld [vmem:[#allocation10] sm:$0xff]
        %v1203 = vld [vmem:[#allocation10 + $0x8] sm:$0xff]
        %v1204 = vld [vmem:[#allocation10 + $0x10] sm:$0xff]
        %v1205 = vld [vmem:[#allocation10 + $0x18] sm:$0xff]
        %v1206 = vld [vmem:[%s6] sm:$0x1]
        %v1208 = vperm.slane %v1206, 0
        %v1211 = vsel %vm367, %v1201, 0
        %1213 = vmatpush.msra.mxu0 0.0
        %1214 = vmatpush.msra.mxu0 0.0
        %1215 = vmatpush.msra.mxu0 0.0
        %1216 = vmatpush.msra.mxu0 0.0
        %1217 = vmatpush.msra.mxu0 0.0
        %1218 = vmatpush.msra.mxu0 0.0
        %1219 = vmatpush.msra.mxu0 0.0
        %1220 = vmatpush.msra.mxu0 0.0
        %1221 = vmatpush.msra.mxu0 0.0
        %1222 = vmatpush.msra.mxu0 0.0
        %1223 = vmatpush.msra.mxu0 0.0
        %1224 = vmatpush.msra.mxu0 0.0
        %1225 = vmatpush.msra.mxu0 %v1205
        %1226 = vmatpush.msra.mxu0 %v1204
        %1227 = vmatpush.msra.mxu0 %v1203
        %1228 = vmatpush.msra.mxu0 %v1202
        %1229 = vmatmul.f32.gmra.mxu0 %v1211
        %v1230 = vpop.f32.mrf.mxu0
        %v1231 = vadd.f32 %v1208, %v1230
        %1232 = vdwg.mxu0
        %1233 = vst.msk [vmem:[%s357] sm:$0xff] %vm367, %v1231
        %s1234 = sand.u32 %s186, 1
        %s1235 = scalar_lea.sflag [#allocation4], %s1234
        %s1236 = sand.u32 %s186, 1
        %s1237 = smul.addr %s1236, 8
        %s1238 = scalar_lea.vmem [#allocation11], %s1237
        // Predicated region
        $region69: #{tpu_custom_call.1} parent=47 // pred_check
          %p1239 = pneg %p196
        $region70: #{tpu_custom_call.1} parent=47 // pred_check_branch
          %1241 = sbr.rel (%p1239) target = $region72
        $region71: #{tpu_custom_call.1} parent=47 // pred_region
          %1243 = vsyncadd %s1235, 0
          %s1244 = smul.addr %s26, 8
          %s1245 = scalar_lea.hbm %s7, %s1244
          %s1247 = sshll.u32 %s1238, 4
          %s1248 = int_to_ptr.vmem [resolvable:$true] %s1247
          %s1249 = sshll.u32 %s1245, 4
          %s1250 = int_to_ptr.hbm [resolvable:$true] %s1249
          %1252 = dma.vmem_to_hbm [thread:$0]  %s1248, 128, %s1250, %s1235
        $region72: #{tpu_custom_call.1} parent=47 // pred_fallthru
          _
      $region48: #{tpu_custom_call.1} parent=5 // pred_fallthru
        _
      %p1253 = scmp.le.s32.totalorder 2, %s21
      // Predicated region
      $region73: #{tpu_custom_call.1} parent=5 // pred_check
        %p1254 = pneg %p1253
      $region74: #{tpu_custom_call.1} parent=5 // pred_check_branch
        %1256 = sbr.rel (%p1254) target = $region76
      $region75: #{tpu_custom_call.1} parent=5 // pred_region
        %s1257 = ssub.s32 %s21, 2
        // Predicated region
        $region77: #{tpu_custom_call.1} parent=75 // pred_check
          %p1258 = pneg %p202
        $region78: #{tpu_custom_call.1} parent=75 // pred_check_branch
          %1260 = sbr.rel (%p1258) target = $region80
        $region79: #{tpu_custom_call.1} parent=75 // pred_region
          %s1261 = sand.u32 %s187, 1
          %s1262 = scalar_lea.sflag [#allocation4], %s1261
          %s1263 = sand.u32 %s187, 1
          %s1264 = smul.addr %s1263, 8
          %s1265 = scalar_lea.vmem [#allocation11], %s1264
          %1267 = dma.done %s1262, 128
        $region80: #{tpu_custom_call.1} parent=75 // pred_fallthru
          _
      $region76: #{tpu_custom_call.1} parent=5 // pred_fallthru
        _
    $region6: #{tpu_custom_call.1} parent=1 // loop_footer
      %s25 = sadd.s32 1, %s21
    $region7: #{tpu_custom_call.1} parent=1 // loop_footer_branch
      %20 = sbr.rel target = $region3
    $region8: #{tpu_custom_call.1} parent=1 // loop_exit
      _
    %1268 = vsyncpa [#allocation3], 1
    %s1269 = scalar_lea.sflag [#allocation3], 1
    %1270 = vsyncpa %s1269, 1
    %1271 = vsyncpa [#allocation6], 1
    %1272 = vsyncpa [#allocation9], 1
    %1273 = vsyncpa [#allocation4], 1
    %s1274 = scalar_lea.sflag [#allocation4], 1
    %1275 = vsyncpa %s1274, 1

</llo_original>
